<compile_context>
chip_gen: v7x
topology: tpu7x:2x2x1
jax: 0.10.0
libtpu: 0.0.40
codegen_flags: <defaults>
</compile_context>

<pallas_src>
import functools

import jax
import jax.numpy as jnp
import numpy as np
from jax.experimental import pallas as pl
from jax.experimental.pallas import tpu as pltpu


def _round_up(v, m):
    return (v + m - 1) // m * m


def _conv_model1_kernel(xio_ref, w1_ref, w2_ref, wls_ref, bl_ref, out_ref,
                        rhs1_ref, h1_ref, rhs2_ref, *,
                        C, N, seg, n_out, pool, n_pool):
    """Whole forward pass for the lane-concatenated batch in one program.

    xio_ref : (2C+1, N*seg + 128) bf16  [xe rows ; xo rows ; valid-mask row], zero padded
    w1_ref  : (2C, 3C+1)  bf16   tap-stacked conv1 weights + bias column
    w2_ref  : (4C, 10C+1) bf16   tap-stacked conv2 weights + bias column
    wls_ref : (8C, 1) f32        linear weights, window-0 rows then window-1 rows
    bl_ref  : (1, 1)  f32
    out_ref : (1, N)  f32
    rhs1_ref: (3C+1, 2W)      bf16 scratch  (conv1 RHS, even | odd phase)
    h1_ref  : (2C, 2W + 128)  bf16 scratch  (staged conv1 activations)
    rhs2_ref: (10C+1, N*n_out) bf16 scratch (conv2 RHS)
    """
    W = N * seg
    C2, C3 = 2 * C, 3 * C

    # ---- build the conv1 RHS in VMEM (single materialisation into scratch) ----------
    xe = xio_ref[0:C, pl.ds(0, W)]            # (C, W) even input samples
    xo = xio_ref[C:C2, pl.ds(0, W)]           # (C, W) odd  input samples
    xe1 = xio_ref[0:C, pl.ds(1, W)]           # xe shifted by +1 (hoisted, one rotate)
    xo1 = xio_ref[C:C2, pl.ds(1, W)]          # xo shifted by +1
    msk = xio_ref[C2:C2 + 1, pl.ds(0, W)]     # (1, W) valid-column bias row (0 in pads)

    # even output phase -> lanes [0, W), odd output phase -> lanes [W, 2W)
    rhs1_ref[0:C, 0:W] = xe
    rhs1_ref[C:C2, 0:W] = xo
    rhs1_ref[C2:C3, 0:W] = xe1
    rhs1_ref[C3:C3 + 1, 0:W] = msk
    rhs1_ref[0:C, W:2 * W] = xo
    rhs1_ref[C:C2, W:2 * W] = xe1
    rhs1_ref[C2:C3, W:2 * W] = xo1
    rhs1_ref[C3:C3 + 1, W:2 * W] = msk

    # ---- conv1 (k=3): both phases, whole batch, ONE bf16 MXU dot; ReLU f32, cast once
    h1 = jnp.dot(w1_ref[...], rhs1_ref[...], preferred_element_type=jnp.float32)
    h1 = jnp.maximum(h1, 0.0).astype(jnp.bfloat16)                  # (2C, 2W)

    # ---- stage h1 so the +1/+2 lane shifts are hoisted (3 rotates total, not 3*N) ---
    h1_ref[:, pl.ds(0, 2 * W)] = h1
    h1_ref[:, pl.ds(2 * W, 128)] = jnp.zeros((C2, 128), jnp.bfloat16)
    he0 = h1_ref[:, pl.ds(0, W)]              # h1 even phase
    ho0 = h1_ref[:, pl.ds(W, W)]              # h1 odd phase
    he1 = h1_ref[:, pl.ds(1, W)]              # even, shifted +1
    ho1 = h1_ref[:, pl.ds(W + 1, W)]          # odd,  shifted +1
    he2 = h1_ref[:, pl.ds(2, W)]              # even, shifted +2

    # ---- assemble conv2 RHS directly into scratch (128-aligned slices only) ---------
    for n in range(N):                        # N is small & static
        s, d = n * seg, n * n_out
        rhs2_ref[0 * C2:1 * C2, d:d + n_out] = he0[:, s:s + n_out]
        rhs2_ref[1 * C2:2 * C2, d:d + n_out] = ho0[:, s:s + n_out]
        rhs2_ref[2 * C2:3 * C2, d:d + n_out] = he1[:, s:s + n_out]
        rhs2_ref[3 * C2:4 * C2, d:d + n_out] = ho1[:, s:s + n_out]
        rhs2_ref[4 * C2:5 * C2, d:d + n_out] = he2[:, s:s + n_out]
    rhs2_ref[5 * C2:5 * C2 + 1, :] = jnp.ones((1, N * n_out), jnp.bfloat16)  # bias row

    # ---- conv2 (k=5, stride 2) + ReLU: ONE bf16 MXU dot for the whole batch ---------
    h2 = jnp.maximum(
        jnp.dot(w2_ref[...], rhs2_ref[...], preferred_element_type=jnp.float32),
        0.0)                                                          # (4C, N*n_out) f32

    # ---- MaxPool1d(256,256) + Linear(8C -> 1): one weighted reduce, one (1,N) store --
    cols = []
    for w in range(n_pool):                   # exactly 2 windows
        row = []
        for n in range(N):
            base = n * n_out + w * pool       # multiples of 256 -> aligned slices
            row.append(jnp.max(h2[:, base:base + pool], axis=1, keepdims=True))
        cols.append(jnp.concatenate(row, axis=1))                     # (4C, N)
    pooled = jnp.concatenate(cols, axis=0)                            # (8C, N)
    out_ref[...] = (jnp.sum(pooled * wls_ref[...], axis=0, keepdims=True)
                    + bl_ref[...])                                    # (1, N) single store


def conv_model1_forward(x, params):
    """x: (N, C, L) float32 (NCW, matching PyTorch). Returns (N, 1) float32."""
    w1, b1, w2, b2, wl, bl = params
    N, C, L = x.shape
    L1 = L - 2                      # conv1 output length (k=3, stride 1, valid)
    L2 = (L1 - 5) // 2 + 1          # conv2 output length (k=5, stride 2, valid)
    pool = 256
    n_pool = L2 // pool
    # The model's view(-1, 4C*2) + Linear(4C*2, 1) implies exactly 2 pooled positions.
    assert n_pool == 2, "ConvModel_1 requires an input length giving 2 MaxPool outputs"
    n_out = n_pool * pool           # conv2 positions actually consumed by the pool (512)
    n_he = n_out + 2                # even-phase conv1 positions needed
    n_ho = n_out + 1                # odd-phase  conv1 positions needed
    seg = _round_up(n_he + 1, 128)  # per-batch lane segment (holds xe[0 .. n_he])
    W = N * seg

    # Pad-region safety: in-kernel shifted slices must stay inside each segment.
    assert n_he + 1 <= seg and n_out + 2 <= seg

    # ---- pack the inputs ONCE (no tap replication): [xe ; xo ; valid-mask] ----------
    xe = x[:, :, 0::2][:, :, : n_he + 1]                      # (N, C, n_he+1)
    xo = x[:, :, 1::2][:, :, : n_ho + 1]                      # (N, C, n_ho+1)
    xe_p = jnp.pad(xe, ((0, 0), (0, 0), (0, seg - (n_he + 1))))
    xo_p = jnp.pad(xo, ((0, 0), (0, 0), (0, seg - (n_ho + 1))))
    mask = (jnp.arange(seg) < n_he).astype(x.dtype)           # bias valid only on real cols
    mask_b = jnp.broadcast_to(mask[None, None, :], (N, 1, seg))
    blk = jnp.concatenate([xe_p, xo_p, mask_b], axis=1)       # (N, 2C+1, seg)
    x_in = jnp.transpose(blk, (1, 0, 2)).reshape(2 * C + 1, W)
    x_in = jnp.pad(x_in, ((0, 0), (0, 128))).astype(jnp.bfloat16)   # (2C+1, W+128)

    # ---- tap-stacked weights with biases folded into the contraction ----------------
    w1s = jnp.concatenate([w1[:, :, k] for k in range(3)] + [b1[:, None]],
                          axis=1).astype(jnp.bfloat16)        # (2C, 3C+1)
    w2s = jnp.concatenate([w2[:, :, k] for k in range(5)] + [b2[:, None]],
                          axis=1).astype(jnp.bfloat16)        # (4C, 10C+1)
    # view(-1, 8C) interleaves (channel, window); regroup as [window0 ; window1] rows.
    wls = jnp.concatenate([wl[0, 0::2], wl[0, 1::2]]).reshape(8 * C, 1)   # f32
    blc = bl.reshape(1, 1)

    kernel = functools.partial(_conv_model1_kernel, C=C, N=N, seg=seg,
                               n_out=n_out, pool=pool, n_pool=n_pool)
    vmem = pl.BlockSpec(memory_space=pltpu.MemorySpace.VMEM)
    out = pl.pallas_call(
        kernel,
        out_shape=jax.ShapeDtypeStruct((1, N), jnp.float32),
        in_specs=[vmem] * 5,
        out_specs=vmem,
        scratch_shapes=[
            pltpu.VMEM((3 * C + 1, 2 * W), jnp.bfloat16),        # conv1 RHS
            pltpu.VMEM((2 * C, 2 * W + 128), jnp.bfloat16),      # staged h1 (shift source)
            pltpu.VMEM((10 * C + 1, N * n_out), jnp.bfloat16),   # conv2 RHS
        ],
    )(x_in, w1s, w2s, wls, blc)
    return out.reshape(N, 1)


def reference_forward(x, params):
    """Plain-JAX reference replicating the PyTorch forward exactly (f32)."""
    w1, b1, w2, b2, wl, bl = params
    dn = ("NCH", "OIH", "NCH")
    h1 = jax.lax.conv_general_dilated(x, w1, (1,), "VALID", dimension_numbers=dn)
    h1 = jnp.maximum(h1 + b1[None, :, None], 0.0)
    h2 = jax.lax.conv_general_dilated(h1, w2, (2,), "VALID", dimension_numbers=dn)
    h2 = jnp.maximum(h2 + b2[None, :, None], 0.0)
    pooled = jax.lax.reduce_window(h2, -jnp.inf, jax.lax.max,
                                   (1, 1, 256), (1, 1, 256), "VALID")
    flat = pooled.reshape(-1, wl.shape[1])
    return flat @ wl.T + bl[None, :]


if __name__ == "__main__":
    # Smallest shapes consistent with the module: MaxPool1d(256,256) + view(-1, 8C)
    # force L2 >= 512, hence L = 1029 (-> L1 = 1027, L2 = 512, 2 pool windows).
    N, C, L = 2, 4, 1029

    key = jax.random.PRNGKey(0)
    kx, k1, k2, k3, k4, k5, k6 = jax.random.split(key, 7)

    def uinit(k, shape, fan_in):
        bound = 1.0 / np.sqrt(fan_in)
        return jax.random.uniform(k, shape, jnp.float32, -bound, bound)

    x = jax.random.normal(kx, (N, C, L), jnp.float32)
    w1 = uinit(k1, (2 * C, C, 3), C * 3)
    b1 = uinit(k2, (2 * C,), C * 3)
    w2 = uinit(k3, (4 * C, 2 * C, 5), 2 * C * 5)
    b2 = uinit(k4, (4 * C,), 2 * C * 5)
    wl = uinit(k5, (1, 8 * C), 8 * C)
    bl = uinit(k6, (1,), 8 * C)
    params = (w1, b1, w2, b2, wl, bl)

    out = jax.block_until_ready(conv_model1_forward(x, params))
    ref = jax.block_until_ready(reference_forward(x, params))
    # bf16 MXU operands vs the f32 reference -> ~1e-2 level differences are expected.
    np.testing.assert_allclose(np.asarray(out), np.asarray(ref), rtol=5e-2, atol=5e-2)
    print("KERNEL_OK")
</pallas_src>

<mosaic_0001>
module attributes {stable_mosaic.version = 11 : i64} {
  func.func @_conv_model1_kernel(%arg0: memref<9x1408xbf16, #tpu.memory_space<vmem>>, %arg1: memref<8x13xbf16, #tpu.memory_space<vmem>>, %arg2: memref<16x41xbf16, #tpu.memory_space<vmem>>, %arg3: memref<32x1xf32, #tpu.memory_space<vmem>>, %arg4: memref<1x1xf32, #tpu.memory_space<vmem>>, %arg5: memref<1x2xf32, #tpu.memory_space<vmem>>, %arg6: memref<13x2560xbf16, #tpu.memory_space<vmem>>, %arg7: memref<8x2688xbf16, #tpu.memory_space<vmem>>, %arg8: memref<41x1024xbf16, #tpu.memory_space<vmem>>) attributes {dimension_semantics = [], scalar_prefetch = 0 : i64, scratch_operands = 3 : i64, tpu.core_type = #tpu.core_type<tc>} {
    %c0 = arith.constant 0 : index
    %c0_0 = arith.constant 0 : index
    %0 = vector.load %arg0[%c0, %c0_0] : memref<9x1408xbf16, #tpu.memory_space<vmem>>, vector<4x1280xbf16>
    %c4 = arith.constant 4 : index
    %c0_1 = arith.constant 0 : index
    %1 = vector.load %arg0[%c4, %c0_1] : memref<9x1408xbf16, #tpu.memory_space<vmem>>, vector<4x1280xbf16>
    %c0_2 = arith.constant 0 : index
    %c1 = arith.constant 1 : index
    %2 = vector.load %arg0[%c0_2, %c1] : memref<9x1408xbf16, #tpu.memory_space<vmem>>, vector<4x1280xbf16>
    %c4_3 = arith.constant 4 : index
    %c1_4 = arith.constant 1 : index
    %3 = vector.load %arg0[%c4_3, %c1_4] : memref<9x1408xbf16, #tpu.memory_space<vmem>>, vector<4x1280xbf16>
    %c8 = arith.constant 8 : index
    %c0_5 = arith.constant 0 : index
    %4 = vector.load %arg0[%c8, %c0_5] : memref<9x1408xbf16, #tpu.memory_space<vmem>>, vector<1x1280xbf16>
    %c0_6 = arith.constant 0 : index
    %c0_7 = arith.constant 0 : index
    %5 = vector.load %arg6[%c0_6, %c0_7] : memref<13x2560xbf16, #tpu.memory_space<vmem>>, vector<4x1280xbf16>
    tpu.vector_store %arg6[%c0_6, %c0_7], %0 {strides = array<i32>} : memref<13x2560xbf16, #tpu.memory_space<vmem>>, vector<4x1280xbf16>,
    %c4_8 = arith.constant 4 : index
    %c0_9 = arith.constant 0 : index
    %6 = vector.load %arg6[%c4_8, %c0_9] : memref<13x2560xbf16, #tpu.memory_space<vmem>>, vector<4x1280xbf16>
    tpu.vector_store %arg6[%c4_8, %c0_9], %1 {strides = array<i32>} : memref<13x2560xbf16, #tpu.memory_space<vmem>>, vector<4x1280xbf16>,
    %c8_10 = arith.constant 8 : index
    %c0_11 = arith.constant 0 : index
    %7 = vector.load %arg6[%c8_10, %c0_11] : memref<13x2560xbf16, #tpu.memory_space<vmem>>, vector<4x1280xbf16>
    tpu.vector_store %arg6[%c8_10, %c0_11], %2 {strides = array<i32>} : memref<13x2560xbf16, #tpu.memory_space<vmem>>, vector<4x1280xbf16>,
    %c12 = arith.constant 12 : index
    %c0_12 = arith.constant 0 : index
    %8 = vector.load %arg6[%c12, %c0_12] : memref<13x2560xbf16, #tpu.memory_space<vmem>>, vector<1x1280xbf16>
    tpu.vector_store %arg6[%c12, %c0_12], %4 {strides = array<i32>} : memref<13x2560xbf16, #tpu.memory_space<vmem>>, vector<1x1280xbf16>,
    %c0_13 = arith.constant 0 : index
    %c1280 = arith.constant 1280 : index
    %9 = vector.load %arg6[%c0_13, %c1280] : memref<13x2560xbf16, #tpu.memory_space<vmem>>, vector<4x1280xbf16>
    tpu.vector_store %arg6[%c0_13, %c1280], %1 {strides = array<i32>} : memref<13x2560xbf16, #tpu.memory_space<vmem>>, vector<4x1280xbf16>,
    %c4_14 = arith.constant 4 : index
    %c1280_15 = arith.constant 1280 : index
    %10 = vector.load %arg6[%c4_14, %c1280_15] : memref<13x2560xbf16, #tpu.memory_space<vmem>>, vector<4x1280xbf16>
    tpu.vector_store %arg6[%c4_14, %c1280_15], %2 {strides = array<i32>} : memref<13x2560xbf16, #tpu.memory_space<vmem>>, vector<4x1280xbf16>,
    %c8_16 = arith.constant 8 : index
    %c1280_17 = arith.constant 1280 : index
    %11 = vector.load %arg6[%c8_16, %c1280_17] : memref<13x2560xbf16, #tpu.memory_space<vmem>>, vector<4x1280xbf16>
    tpu.vector_store %arg6[%c8_16, %c1280_17], %3 {strides = array<i32>} : memref<13x2560xbf16, #tpu.memory_space<vmem>>, vector<4x1280xbf16>,
    %c12_18 = arith.constant 12 : index
    %c1280_19 = arith.constant 1280 : index
    %12 = vector.load %arg6[%c12_18, %c1280_19] : memref<13x2560xbf16, #tpu.memory_space<vmem>>, vector<1x1280xbf16>
    tpu.vector_store %arg6[%c12_18, %c1280_19], %4 {strides = array<i32>} : memref<13x2560xbf16, #tpu.memory_space<vmem>>, vector<1x1280xbf16>,
    %c0_20 = arith.constant 0 : index
    %c0_21 = arith.constant 0 : index
    %13 = vector.load %arg1[%c0_20, %c0_21] : memref<8x13xbf16, #tpu.memory_space<vmem>>, vector<8x13xbf16>
    %c0_22 = arith.constant 0 : index
    %c0_23 = arith.constant 0 : index
    %14 = vector.load %arg6[%c0_22, %c0_23] : memref<13x2560xbf16, #tpu.memory_space<vmem>>, vector<13x2560xbf16>
    %cst = arith.constant dense<0.000000e+00> : vector<8x2560xf32>
    %15 = tpu.matmul %13, %14, %cst {dimension_numbers = #tpu.dot_dimension_numbers<[1], [0], [0], [1], [0, 0, 1, 1], [], []>} : vector<8x13xbf16>, vector<13x2560xbf16>, vector<8x2560xf32> -> vector<8x2560xf32>
    %cst_24 = arith.constant 0.000000e+00 : f32
    %16 = vector.broadcast %cst_24 : f32 to vector<8x2560xf32>
    %17 = arith.maximumf %15, %16 : vector<8x2560xf32>
    %18 = arith.truncf %17 : vector<8x2560xf32> to vector<8x2560xbf16>
    %c0_25 = arith.constant 0 : index
    %c0_26 = arith.constant 0 : index
    %19 = vector.load %arg7[%c0_25, %c0_26] : memref<8x2688xbf16, #tpu.memory_space<vmem>>, vector<8x2560xbf16>
    tpu.vector_store %arg7[%c0_25, %c0_26], %18 {strides = array<i32>} : memref<8x2688xbf16, #tpu.memory_space<vmem>>, vector<8x2560xbf16>,
    %cst_27 = arith.constant 0.000000e+00 : bf16
    %20 = vector.broadcast %cst_27 : bf16 to vector<8x128xbf16>
    %c0_28 = arith.constant 0 : index
    %c2560 = arith.constant 2560 : index
    %21 = vector.load %arg7[%c0_28, %c2560] : memref<8x2688xbf16, #tpu.memory_space<vmem>>, vector<8x128xbf16>
    tpu.vector_store %arg7[%c0_28, %c2560], %20 {strides = array<i32>} : memref<8x2688xbf16, #tpu.memory_space<vmem>>, vector<8x128xbf16>,
    %c0_29 = arith.constant 0 : index
    %c0_30 = arith.constant 0 : index
    %22 = vector.load %arg7[%c0_29, %c0_30] : memref<8x2688xbf16, #tpu.memory_space<vmem>>, vector<8x1280xbf16>
    %c0_31 = arith.constant 0 : index
    %c1280_32 = arith.constant 1280 : index
    %23 = vector.load %arg7[%c0_31, %c1280_32] : memref<8x2688xbf16, #tpu.memory_space<vmem>>, vector<8x1280xbf16>
    %c0_33 = arith.constant 0 : index
    %c1_34 = arith.constant 1 : index
    %24 = vector.load %arg7[%c0_33, %c1_34] : memref<8x2688xbf16, #tpu.memory_space<vmem>>, vector<8x1280xbf16>
    %c0_35 = arith.constant 0 : index
    %c1281 = arith.constant 1281 : index
    %25 = vector.load %arg7[%c0_35, %c1281] : memref<8x2688xbf16, #tpu.memory_space<vmem>>, vector<8x1280xbf16>
    %c0_36 = arith.constant 0 : index
    %c2 = arith.constant 2 : index
    %26 = vector.load %arg7[%c0_36, %c2] : memref<8x2688xbf16, #tpu.memory_space<vmem>>, vector<8x1280xbf16>
    %27 = vector.extract_strided_slice %22 {offsets = [0, 0], sizes = [8, 512], strides = [1, 1]} : vector<8x1280xbf16> to vector<8x512xbf16>
    %c0_37 = arith.constant 0 : index
    %c0_38 = arith.constant 0 : index
    %28 = vector.load %arg8[%c0_37, %c0_38] : memref<41x1024xbf16, #tpu.memory_space<vmem>>, vector<8x512xbf16>
    tpu.vector_store %arg8[%c0_37, %c0_38], %27 {strides = array<i32>} : memref<41x1024xbf16, #tpu.memory_space<vmem>>, vector<8x512xbf16>,
    %29 = vector.extract_strided_slice %23 {offsets = [0, 0], sizes = [8, 512], strides = [1, 1]} : vector<8x1280xbf16> to vector<8x512xbf16>
    %c8_39 = arith.constant 8 : index
    %c0_40 = arith.constant 0 : index
    %30 = vector.load %arg8[%c8_39, %c0_40] : memref<41x1024xbf16, #tpu.memory_space<vmem>>, vector<8x512xbf16>
    tpu.vector_store %arg8[%c8_39, %c0_40], %29 {strides = array<i32>} : memref<41x1024xbf16, #tpu.memory_space<vmem>>, vector<8x512xbf16>,
    %31 = vector.extract_strided_slice %24 {offsets = [0, 0], sizes = [8, 512], strides = [1, 1]} : vector<8x1280xbf16> to vector<8x512xbf16>
    %c16 = arith.constant 16 : index
    %c0_41 = arith.constant 0 : index
    %32 = vector.load %arg8[%c16, %c0_41] : memref<41x1024xbf16, #tpu.memory_space<vmem>>, vector<8x512xbf16>
    tpu.vector_store %arg8[%c16, %c0_41], %31 {strides = array<i32>} : memref<41x1024xbf16, #tpu.memory_space<vmem>>, vector<8x512xbf16>,
    %33 = vector.extract_strided_slice %25 {offsets = [0, 0], sizes = [8, 512], strides = [1, 1]} : vector<8x1280xbf16> to vector<8x512xbf16>
    %c24 = arith.constant 24 : index
    %c0_42 = arith.constant 0 : index
    %34 = vector.load %arg8[%c24, %c0_42] : memref<41x1024xbf16, #tpu.memory_space<vmem>>, vector<8x512xbf16>
    tpu.vector_store %arg8[%c24, %c0_42], %33 {strides = array<i32>} : memref<41x1024xbf16, #tpu.memory_space<vmem>>, vector<8x512xbf16>,
    %35 = vector.extract_strided_slice %26 {offsets = [0, 0], sizes = [8, 512], strides = [1, 1]} : vector<8x1280xbf16> to vector<8x512xbf16>
    %c32 = arith.constant 32 : index
    %c0_43 = arith.constant 0 : index
    %36 = vector.load %arg8[%c32, %c0_43] : memref<41x1024xbf16, #tpu.memory_space<vmem>>, vector<8x512xbf16>
    tpu.vector_store %arg8[%c32, %c0_43], %35 {strides = array<i32>} : memref<41x1024xbf16, #tpu.memory_space<vmem>>, vector<8x512xbf16>,
    %37 = vector.extract_strided_slice %22 {offsets = [0, 640], sizes = [8, 512], strides = [1, 1]} : vector<8x1280xbf16> to vector<8x512xbf16>
    %c0_44 = arith.constant 0 : index
    %c512 = arith.constant 512 : index
    %38 = vector.load %arg8[%c0_44, %c512] : memref<41x1024xbf16, #tpu.memory_space<vmem>>, vector<8x512xbf16>
    tpu.vector_store %arg8[%c0_44, %c512], %37 {strides = array<i32>} : memref<41x1024xbf16, #tpu.memory_space<vmem>>, vector<8x512xbf16>,
    %39 = vector.extract_strided_slice %23 {offsets = [0, 640], sizes = [8, 512], strides = [1, 1]} : vector<8x1280xbf16> to vector<8x512xbf16>
    %c8_45 = arith.constant 8 : index
    %c512_46 = arith.constant 512 : index
    %40 = vector.load %arg8[%c8_45, %c512_46] : memref<41x1024xbf16, #tpu.memory_space<vmem>>, vector<8x512xbf16>
    tpu.vector_store %arg8[%c8_45, %c512_46], %39 {strides = array<i32>} : memref<41x1024xbf16, #tpu.memory_space<vmem>>, vector<8x512xbf16>,
    %41 = vector.extract_strided_slice %24 {offsets = [0, 640], sizes = [8, 512], strides = [1, 1]} : vector<8x1280xbf16> to vector<8x512xbf16>
    %c16_47 = arith.constant 16 : index
    %c512_48 = arith.constant 512 : index
    %42 = vector.load %arg8[%c16_47, %c512_48] : memref<41x1024xbf16, #tpu.memory_space<vmem>>, vector<8x512xbf16>
    tpu.vector_store %arg8[%c16_47, %c512_48], %41 {strides = array<i32>} : memref<41x1024xbf16, #tpu.memory_space<vmem>>, vector<8x512xbf16>,
    %43 = vector.extract_strided_slice %25 {offsets = [0, 640], sizes = [8, 512], strides = [1, 1]} : vector<8x1280xbf16> to vector<8x512xbf16>
    %c24_49 = arith.constant 24 : index
    %c512_50 = arith.constant 512 : index
    %44 = vector.load %arg8[%c24_49, %c512_50] : memref<41x1024xbf16, #tpu.memory_space<vmem>>, vector<8x512xbf16>
    tpu.vector_store %arg8[%c24_49, %c512_50], %43 {strides = array<i32>} : memref<41x1024xbf16, #tpu.memory_space<vmem>>, vector<8x512xbf16>,
    %45 = vector.extract_strided_slice %26 {offsets = [0, 640], sizes = [8, 512], strides = [1, 1]} : vector<8x1280xbf16> to vector<8x512xbf16>
    %c32_51 = arith.constant 32 : index
    %c512_52 = arith.constant 512 : index
    %46 = vector.load %arg8[%c32_51, %c512_52] : memref<41x1024xbf16, #tpu.memory_space<vmem>>, vector<8x512xbf16>
    tpu.vector_store %arg8[%c32_51, %c512_52], %45 {strides = array<i32>} : memref<41x1024xbf16, #tpu.memory_space<vmem>>, vector<8x512xbf16>,
    %cst_53 = arith.constant 1.000000e+00 : bf16
    %47 = vector.broadcast %cst_53 : bf16 to vector<1x1024xbf16>
    %c40 = arith.constant 40 : index
    %c0_54 = arith.constant 0 : index
    %48 = vector.load %arg8[%c40, %c0_54] : memref<41x1024xbf16, #tpu.memory_space<vmem>>, vector<1x1024xbf16>
    tpu.vector_store %arg8[%c40, %c0_54], %47 {strides = array<i32>} : memref<41x1024xbf16, #tpu.memory_space<vmem>>, vector<1x1024xbf16>,
    %c0_55 = arith.constant 0 : index
    %c0_56 = arith.constant 0 : index
    %49 = vector.load %arg2[%c0_55, %c0_56] : memref<16x41xbf16, #tpu.memory_space<vmem>>, vector<16x41xbf16>
    %c0_57 = arith.constant 0 : index
    %c0_58 = arith.constant 0 : index
    %50 = vector.load %arg8[%c0_57, %c0_58] : memref<41x1024xbf16, #tpu.memory_space<vmem>>, vector<41x1024xbf16>
    %cst_59 = arith.constant dense<0.000000e+00> : vector<16x1024xf32>
    %51 = tpu.matmul %49, %50, %cst_59 {dimension_numbers = #tpu.dot_dimension_numbers<[1], [0], [0], [1], [0, 0, 1, 1], [], []>} : vector<16x41xbf16>, vector<41x1024xbf16>, vector<16x1024xf32> -> vector<16x1024xf32>
    %cst_60 = arith.constant 0.000000e+00 : f32
    %52 = vector.broadcast %cst_60 : f32 to vector<16x1024xf32>
    %53 = arith.maximumf %51, %52 : vector<16x1024xf32>
    %54 = vector.extract_strided_slice %53 {offsets = [0, 0], sizes = [16, 256], strides = [1, 1]} : vector<16x1024xf32> to vector<16x256xf32>
    %cst_61 = arith.constant dense<0xFF800000> : vector<16xf32>
    %55 = vector.multi_reduction <maximumf>, %54, %cst_61 [1] : vector<16x256xf32> to vector<16xf32>
    %56 = vector.shape_cast %55 : vector<16xf32> to vector<16x1xf32>
    %57 = vector.extract_strided_slice %53 {offsets = [0, 512], sizes = [16, 256], strides = [1, 1]} : vector<16x1024xf32> to vector<16x256xf32>
    %cst_62 = arith.constant dense<0xFF800000> : vector<16xf32>
    %58 = vector.multi_reduction <maximumf>, %57, %cst_62 [1] : vector<16x256xf32> to vector<16xf32>
    %59 = vector.shape_cast %58 : vector<16xf32> to vector<16x1xf32>
    %60 = tpu.concatenate %56, %59 in 1 : vector<16x1xf32>, vector<16x1xf32> -> vector<16x2xf32>
    %61 = vector.extract_strided_slice %53 {offsets = [0, 256], sizes = [16, 256], strides = [1, 1]} : vector<16x1024xf32> to vector<16x256xf32>
    %cst_63 = arith.constant dense<0xFF800000> : vector<16xf32>
    %62 = vector.multi_reduction <maximumf>, %61, %cst_63 [1] : vector<16x256xf32> to vector<16xf32>
    %63 = vector.shape_cast %62 : vector<16xf32> to vector<16x1xf32>
    %64 = vector.extract_strided_slice %53 {offsets = [0, 768], sizes = [16, 256], strides = [1, 1]} : vector<16x1024xf32> to vector<16x256xf32>
    %cst_64 = arith.constant dense<0xFF800000> : vector<16xf32>
    %65 = vector.multi_reduction <maximumf>, %64, %cst_64 [1] : vector<16x256xf32> to vector<16xf32>
    %66 = vector.shape_cast %65 : vector<16xf32> to vector<16x1xf32>
    %67 = tpu.concatenate %63, %66 in 1 : vector<16x1xf32>, vector<16x1xf32> -> vector<16x2xf32>
    %68 = tpu.concatenate %60, %67 in 0 : vector<16x2xf32>, vector<16x2xf32> -> vector<32x2xf32>
    %c0_65 = arith.constant 0 : index
    %c0_66 = arith.constant 0 : index
    %69 = vector.load %arg3[%c0_65, %c0_66] : memref<32x1xf32, #tpu.memory_space<vmem>>, vector<32x1xf32>
    %70 = vector.broadcast %69 : vector<32x1xf32> to vector<32x2xf32>
    %71 = arith.mulf %68, %70 : vector<32x2xf32>
    %cst_67 = arith.constant dense<0.000000e+00> : vector<2xf32>
    %72 = vector.multi_reduction <add>, %71, %cst_67 [0] : vector<32x2xf32> to vector<2xf32>
    %73 = vector.shape_cast %72 : vector<2xf32> to vector<1x2xf32>
    %c0_68 = arith.constant 0 : index
    %c0_69 = arith.constant 0 : index
    %74 = vector.load %arg4[%c0_68, %c0_69] : memref<1x1xf32, #tpu.memory_space<vmem>>, vector<1x1xf32>
    %75 = vector.broadcast %74 : vector<1x1xf32> to vector<1x2xf32>
    %76 = arith.addf %73, %75 : vector<1x2xf32>
    %c0_70 = arith.constant 0 : index
    %c0_71 = arith.constant 0 : index
    %77 = vector.load %arg5[%c0_70, %c0_71] : memref<1x2xf32, #tpu.memory_space<vmem>>, vector<1x2xf32>
    tpu.vector_store %arg5[%c0_70, %c0_71], %76 {strides = array<i32>} : memref<1x2xf32, #tpu.memory_space<vmem>>, vector<1x2xf32>,
    return
  }
}

</mosaic_0001>

<llo_original>
// kernel: tpu_custom_call.1
$region0: #{tpu_custom_call.1}
  #allocation0 [shape = 'u32[]', space=smem, size = 0x4, offset = 0x4, fixed_abs, tag = 'smem constant byte address 0x4 - core index']
  #allocation1 [shape = 'u32[144,128]{1,0:T(1,128)}', space=vmem, size = 0x12000, scoped, tag = 'internal scratch']
  #allocation2 [shape = 'bf16[13,2560]{1,0:T(8,128)(2,1)}', space=vmem, size = 0x14000, scoped, tag = 'scratch operand']
  #allocation3 [shape = 'bf16[8,2688]{1,0:T(8,128)(2,1)}', space=vmem, size = 0xa800, scoped, tag = 'scratch operand']
  #allocation4 [shape = 'bf16[41,1024]{1,0:T(8,128)(2,1)}', space=vmem, size = 0x18000, scoped, tag = 'scratch operand']
  #allocation5 [shape = 'f32[1,1]{1,0:T(1,128)S(1)}', space=vmem, size = 0x200, scoped, tag = 'scoped memory for tpu_custom_call.1']
  %s0 = inlined_call_operand.hbm [shape: bf16[9,1408], index: 0, kind: input, shape index: {}]
  %s1 = inlined_call_operand.vmem [shape: bf16[8,13], index: 1, kind: input, shape index: {}]
  %s2 = inlined_call_operand.vmem [shape: bf16[16,41], index: 2, kind: input, shape index: {}]
  %s3 = inlined_call_operand.vmem [shape: f32[32,1], index: 3, kind: input, shape index: {}]
  %s4 = inlined_call_operand.<no memory space> [shape: f32[1,1], index: 4, kind: input, shape index: {}]
  %s5 = inlined_call_operand.hbm [shape: f32[1,2], index: 5, kind: output, shape index: {}]
  %s6 = sld [smem:[#allocation0]]
  $region34: #{tpu_custom_call.1} parent=0
    _
  %s8 = ssub.s32 1, %s6
  %s9 = scalar_select 0, %s8, %s6
  %v10 = vstv %s4
  %11 = vst [vmem:[#allocation5] sm:$0x1] %v10
  $region1: #{tpu_custom_call.1} parent=0
    #allocation6 [shape = 'u8[45056]{0}', space=vmem, size = 0xb000, scoped, tag = 'input window, operand 0, single buffered']
    #allocation7 [shape = 's32[1]{0}', space=sflag, size = 0x4, scoped, tag = 'scoped memory for tpu_custom_call.1']
    #allocation8 [shape = 's32[1]{0}', space=sflag, size = 0x4, scoped, tag = 'scoped memory for tpu_custom_call.1']
    #allocation9 [shape = 'u8[512]{0}', space=vmem, size = 0x400, scoped, tag = 'output window, operand 0, single buffered']
    %12 = vsyncpa [#allocation7], 0
    %13 = vsyncpa [#allocation8], 0
    // Predicated region
    $region2: #{tpu_custom_call.1} parent=1 // pred_check
      _
    $region3: #{tpu_custom_call.1} parent=1 // pred_check_branch
      %15 = sbr.rel (0) target = $region5
    $region4: #{tpu_custom_call.1} parent=1 // pred_region
      %s17 = ssub.s32 1408, 1408
      %18 = vsyncadd [#allocation7], %s17
      %s19 = sshll.u32 [#allocation6], 4
      %s20 = int_to_ptr.vmem [resolvable:$true] %s19
      %25 = dma.hbm_to_vmem [thread:$0]  %s0, 1408, %s20, [#allocation7], 704, 704, 44
    $region5: #{tpu_custom_call.1} parent=1 // pred_fallthru
      _
    // Predicated region
    $region6: #{tpu_custom_call.1} parent=1 // pred_check
      _
    $region7: #{tpu_custom_call.1} parent=1 // pred_check_branch
      %27 = sbr.rel (0) target = $region9
    $region8: #{tpu_custom_call.1} parent=1 // pred_region
      _
    $region9: #{tpu_custom_call.1} parent=1 // pred_fallthru
      _
    // Predicated region
    $region10: #{tpu_custom_call.1} parent=1 // pred_check
      _
    $region11: #{tpu_custom_call.1} parent=1 // pred_check_branch
      %29 = sbr.rel (0) target = $region13
    $region12: #{tpu_custom_call.1} parent=1 // pred_region
      _
    $region13: #{tpu_custom_call.1} parent=1 // pred_fallthru
      _
    // Predicated region
    $region14: #{tpu_custom_call.1} parent=1 // pred_check
      _
    $region15: #{tpu_custom_call.1} parent=1 // pred_check_branch
      %31 = sbr.rel (0) target = $region17
    $region16: #{tpu_custom_call.1} parent=1 // pred_region
      _
    $region17: #{tpu_custom_call.1} parent=1 // pred_fallthru
      _
    // Predicated region
    $region18: #{tpu_custom_call.1} parent=1 // pred_check
      _
    $region19: #{tpu_custom_call.1} parent=1 // pred_check_branch
      %33 = sbr.rel (0) target = $region21
    $region20: #{tpu_custom_call.1} parent=1 // pred_region
      _
    $region21: #{tpu_custom_call.1} parent=1 // pred_fallthru
      _
    // Predicated region
    $region22: #{tpu_custom_call.1} parent=1 // pred_check
      _
    $region23: #{tpu_custom_call.1} parent=1 // pred_check_branch
      %35 = sbr.rel (0) target = $region25
    $region24: #{tpu_custom_call.1} parent=1 // pred_region
      %36 = dma.done [#allocation7], 1408
    $region25: #{tpu_custom_call.1} parent=1 // pred_fallthru
      _
    %v39 = vld [vmem:[#allocation6] sm:$0x33]
    %v40 = vld [vmem:[#allocation6 + $0x8] sm:$0x33]
    %v41 = vld [vmem:[#allocation6 + $0x10] sm:$0x33]
    %v42 = vld [vmem:[#allocation6 + $0x18] sm:$0x33]
    %v43 = vld [vmem:[#allocation6 + $0x20] sm:$0x33]
    %v44 = vld [vmem:[#allocation6] sm:$0xcc]
    %v45 = vld [vmem:[#allocation6 + $0x8] sm:$0xcc]
    %v46 = vld [vmem:[#allocation6 + $0x10] sm:$0xcc]
    %v47 = vld [vmem:[#allocation6 + $0x18] sm:$0xcc]
    %v48 = vld [vmem:[#allocation6 + $0x20] sm:$0xcc]
    %v49 = vld [vmem:[#allocation6 + $0x28] sm:$0x3]
    %v50 = vld [vmem:[#allocation6 + $0x28] sm:$0xc]
    %v51 = vld [vmem:[#allocation6 + $0x2c] sm:$0x11]
    %v52 = vld [vmem:[#allocation6 + $0x34] sm:$0x11]
    %v53 = vld [vmem:[#allocation6 + $0x3c] sm:$0x11]
    %v54 = vld [vmem:[#allocation6 + $0x44] sm:$0x11]
    %v55 = vld [vmem:[#allocation6 + $0x4c] sm:$0x11]
    %56 = vst [vmem:[#allocation2] sm:$0x33] %v39
    %57 = vst [vmem:[#allocation2 + $0x8] sm:$0x33] %v40
    %58 = vst [vmem:[#allocation2 + $0x10] sm:$0x33] %v41
    %59 = vst [vmem:[#allocation2 + $0x18] sm:$0x33] %v42
    %60 = vst [vmem:[#allocation2 + $0x20] sm:$0x33] %v43
    %61 = vst [vmem:[#allocation2] sm:$0xcc] %v44
    %62 = vst [vmem:[#allocation2 + $0x8] sm:$0xcc] %v45
    %63 = vst [vmem:[#allocation2 + $0x10] sm:$0xcc] %v46
    %64 = vst [vmem:[#allocation2 + $0x18] sm:$0xcc] %v47
    %65 = vst [vmem:[#allocation2 + $0x20] sm:$0xcc] %v48
    %72 = vrot.lane.b32.xlu0 %v39, 127
    %v73 = vpop.permute.xlu0 %72
    %74 = vrot.lane.b32.xlu0 %v40, 127
    %v75 = vpop.permute.xlu0 %74
    %76 = vrot.lane.b32.xlu0 %v41, 127
    %v77 = vpop.permute.xlu0 %76
    %78 = vrot.lane.b32.xlu0 %v42, 127
    %v79 = vpop.permute.xlu0 %78
    %80 = vrot.lane.b32.xlu0 %v43, 127
    %v81 = vpop.permute.xlu0 %80
    %82 = vrot.lane.b32.xlu0 %v49, 127
    %v83 = vpop.permute.xlu0 %82
    %v84 = vrot.slane %v73, 4
    %v85 = vrot.slane %v75, 4
    %v86 = vrot.slane %v77, 4
    %v87 = vrot.slane %v79, 4
    %v88 = vrot.slane %v81, 4
    %v89 = vrot.slane %v83, 4
    %vm90 = vcmask 1043456
    %v91 = vsel %vm90, %v84, %v85
    %vm92 = vcmask 1039360
    %v93 = vsel %vm92, %v73, %v91
    %v94 = vsel %vm90, %v85, %v86
    %v95 = vsel %vm92, %v75, %v94
    %v96 = vsel %vm90, %v86, %v87
    %v97 = vsel %vm92, %v77, %v96
    %v98 = vsel %vm90, %v87, %v88
    %v99 = vsel %vm92, %v79, %v98
    %v100 = vsel %vm90, %v88, %v89
    %v101 = vsel %vm92, %v81, %v100
    %107 = vst [vmem:[#allocation2 + $0x50] sm:$0x33] %v93
    %108 = vst [vmem:[#allocation2 + $0x58] sm:$0x33] %v95
    %109 = vst [vmem:[#allocation2 + $0x60] sm:$0x33] %v97
    %110 = vst [vmem:[#allocation2 + $0x68] sm:$0x33] %v99
    %111 = vst [vmem:[#allocation2 + $0x70] sm:$0x33] %v101
    %v117 = vrot.slane %v51, 6
    %v118 = vrot.slane %v52, 6
    %v119 = vrot.slane %v53, 6
    %v120 = vrot.slane %v54, 6
    %v121 = vrot.slane %v55, 6
    %vm127 = vcmask 1042434
    %vm128 = vsmask.f32 2304
    %vm129 = vmand %vm127, %vm128
    %vm130 = vcmask 1046534
    %vm131 = vsmask.f32 6400
    %vm132 = vmand %vm130, %vm131
    %vm133 = vmor %vm132, %vm129
    %v134 = vld [vmem:[#allocation2 + $0x50] sm:$0x44]
    %v135 = vsel %vm133, %v117, %v134
    %136 = vst [vmem:[#allocation2 + $0x50] sm:$0x44] %v135
    %v137 = vld [vmem:[#allocation2 + $0x58] sm:$0x44]
    %v138 = vsel %vm133, %v118, %v137
    %139 = vst [vmem:[#allocation2 + $0x58] sm:$0x44] %v138
    %v140 = vld [vmem:[#allocation2 + $0x60] sm:$0x44]
    %v141 = vsel %vm133, %v119, %v140
    %142 = vst [vmem:[#allocation2 + $0x60] sm:$0x44] %v141
    %v143 = vld [vmem:[#allocation2 + $0x68] sm:$0x44]
    %v144 = vsel %vm133, %v120, %v143
    %145 = vst [vmem:[#allocation2 + $0x68] sm:$0x44] %v144
    %v146 = vld [vmem:[#allocation2 + $0x70] sm:$0x44]
    %v147 = vsel %vm133, %v121, %v146
    %148 = vst [vmem:[#allocation2 + $0x70] sm:$0x44] %v147
    %v154 = vrot.slane %v44, 6
    %v155 = vrot.slane %v154, 4
    %v156 = vrot.slane %v45, 6
    %v157 = vrot.slane %v156, 4
    %v158 = vrot.slane %v46, 6
    %v159 = vrot.slane %v158, 4
    %v160 = vrot.slane %v47, 6
    %v161 = vrot.slane %v160, 4
    %v162 = vrot.slane %v48, 6
    %v163 = vrot.slane %v162, 4
    %169 = vst [vmem:[#allocation2 + $0x28] sm:$0x33] %v155
    %170 = vst [vmem:[#allocation2 + $0x30] sm:$0x33] %v157
    %171 = vst [vmem:[#allocation2 + $0x38] sm:$0x33] %v159
    %172 = vst [vmem:[#allocation2 + $0x40] sm:$0x33] %v161
    %173 = vst [vmem:[#allocation2 + $0x48] sm:$0x33] %v163
    %v174 = vrot.slane %v39, 6
    %v175 = vrot.slane %v40, 6
    %v176 = vrot.slane %v41, 6
    %v177 = vrot.slane %v42, 6
    %v178 = vrot.slane %v43, 6
    %v179 = vrot.slane %v49, 6
    %180 = vrot.lane.b32.xlu0 %v174, 127
    %v181 = vpop.permute.xlu0 %180
    %182 = vrot.lane.b32.xlu0 %v175, 127
    %v183 = vpop.permute.xlu0 %182
    %184 = vrot.lane.b32.xlu0 %v176, 127
    %v185 = vpop.permute.xlu0 %184
    %186 = vrot.lane.b32.xlu0 %v177, 127
    %v187 = vpop.permute.xlu0 %186
    %188 = vrot.lane.b32.xlu0 %v178, 127
    %v189 = vpop.permute.xlu0 %188
    %190 = vrot.lane.b32.xlu0 %v179, 127
    %v191 = vpop.permute.xlu0 %190
    %v192 = vrot.slane %v181, 4
    %v193 = vrot.slane %v183, 4
    %v194 = vrot.slane %v185, 4
    %v195 = vrot.slane %v187, 4
    %v196 = vrot.slane %v189, 4
    %v197 = vrot.slane %v191, 4
    %v198 = vsel %vm90, %v192, %v193
    %v199 = vsel %vm92, %v181, %v198
    %v200 = vsel %vm90, %v193, %v194
    %v201 = vsel %vm92, %v183, %v200
    %v202 = vsel %vm90, %v194, %v195
    %v203 = vsel %vm92, %v185, %v202
    %v204 = vsel %vm90, %v195, %v196
    %v205 = vsel %vm92, %v187, %v204
    %v206 = vsel %vm90, %v196, %v197
    %v207 = vsel %vm92, %v189, %v206
    %213 = vst [vmem:[#allocation2 + $0x28] sm:$0xcc] %v199
    %214 = vst [vmem:[#allocation2 + $0x30] sm:$0xcc] %v201
    %215 = vst [vmem:[#allocation2 + $0x38] sm:$0xcc] %v203
    %216 = vst [vmem:[#allocation2 + $0x40] sm:$0xcc] %v205
    %217 = vst [vmem:[#allocation2 + $0x48] sm:$0xcc] %v207
    %v219 = vrot.slane %v50, 6
    %v220 = vrot.slane %v219, 4
    %221 = vrot.lane.b32.xlu0 %v155, 127
    %v222 = vpop.permute.xlu0 %221
    %223 = vrot.lane.b32.xlu0 %v157, 127
    %v224 = vpop.permute.xlu0 %223
    %225 = vrot.lane.b32.xlu0 %v159, 127
    %v226 = vpop.permute.xlu0 %225
    %227 = vrot.lane.b32.xlu0 %v161, 127
    %v228 = vpop.permute.xlu0 %227
    %229 = vrot.lane.b32.xlu0 %v163, 127
    %v230 = vpop.permute.xlu0 %229
    %231 = vrot.lane.b32.xlu0 %v220, 127
    %v232 = vpop.permute.xlu0 %231
    %v233 = vrot.slane %v222, 4
    %v234 = vrot.slane %v224, 4
    %v235 = vrot.slane %v226, 4
    %v236 = vrot.slane %v228, 4
    %v237 = vrot.slane %v230, 4
    %v238 = vrot.slane %v232, 4
    %v239 = vsel %vm90, %v233, %v234
    %v240 = vsel %vm92, %v222, %v239
    %v241 = vsel %vm90, %v234, %v235
    %v242 = vsel %vm92, %v224, %v241
    %v243 = vsel %vm90, %v235, %v236
    %v244 = vsel %vm92, %v226, %v243
    %v245 = vsel %vm90, %v236, %v237
    %v246 = vsel %vm92, %v228, %v245
    %v247 = vsel %vm90, %v237, %v238
    %v248 = vsel %vm92, %v230, %v247
    %254 = vst [vmem:[#allocation2 + $0x78] sm:$0x33] %v240
    %255 = vst [vmem:[#allocation2 + $0x80] sm:$0x33] %v242
    %256 = vst [vmem:[#allocation2 + $0x88] sm:$0x33] %v244
    %257 = vst [vmem:[#allocation2 + $0x90] sm:$0x33] %v246
    %258 = vst [vmem:[#allocation2 + $0x98] sm:$0x33] %v248
    %v259 = vld [vmem:[#allocation2 + $0x78] sm:$0x44]
    %v260 = vsel %vm133, %v117, %v259
    %261 = vst [vmem:[#allocation2 + $0x78] sm:$0x44] %v260
    %v262 = vld [vmem:[#allocation2 + $0x80] sm:$0x44]
    %v263 = vsel %vm133, %v118, %v262
    %264 = vst [vmem:[#allocation2 + $0x80] sm:$0x44] %v263
    %v265 = vld [vmem:[#allocation2 + $0x88] sm:$0x44]
    %v266 = vsel %vm133, %v119, %v265
    %267 = vst [vmem:[#allocation2 + $0x88] sm:$0x44] %v266
    %v268 = vld [vmem:[#allocation2 + $0x90] sm:$0x44]
    %v269 = vsel %vm133, %v120, %v268
    %270 = vst [vmem:[#allocation2 + $0x90] sm:$0x44] %v269
    %v271 = vld [vmem:[#allocation2 + $0x98] sm:$0x44]
    %v272 = vsel %vm133, %v121, %v271
    %273 = vst [vmem:[#allocation2 + $0x98] sm:$0x44] %v272
    %v274 = vld [vmem:[%s1] sm:$0xf]
    %v275 = vld [vmem:[#allocation2] sm:$0xff]
    %v276 = vld [vmem:[#allocation2 + $0x8] sm:$0xff]
    %v277 = vld [vmem:[#allocation2 + $0x10] sm:$0xff]
    %v278 = vld [vmem:[#allocation2 + $0x18] sm:$0xff]
    %v279 = vld [vmem:[#allocation2 + $0x20] sm:$0xff]
    %v280 = vld [vmem:[#allocation2 + $0x28] sm:$0xff]
    %v281 = vld [vmem:[#allocation2 + $0x30] sm:$0xff]
    %v282 = vld [vmem:[#allocation2 + $0x38] sm:$0xff]
    %v283 = vld [vmem:[#allocation2 + $0x40] sm:$0xff]
    %v284 = vld [vmem:[#allocation2 + $0x48] sm:$0xff]
    %v285 = vld [vmem:[#allocation2 + $0x50] sm:$0x77]
    %v286 = vld [vmem:[#allocation2 + $0x58] sm:$0x77]
    %v287 = vld [vmem:[#allocation2 + $0x60] sm:$0x77]
    %v288 = vld [vmem:[#allocation2 + $0x68] sm:$0x77]
    %v289 = vld [vmem:[#allocation2 + $0x70] sm:$0x77]
    %v290 = vld [vmem:[#allocation2 + $0x78] sm:$0x77]
    %v291 = vld [vmem:[#allocation2 + $0x80] sm:$0x77]
    %v292 = vld [vmem:[#allocation2 + $0x88] sm:$0x77]
    %v293 = vld [vmem:[#allocation2 + $0x90] sm:$0x77]
    %v294 = vld [vmem:[#allocation2 + $0x98] sm:$0x77]
    %v315 = vunpack.c.l.b16 %v275
    %v316 = vunpack.c.h.b16 %v275
    %v317 = vunpack.c.l.b16 %v276
    %v318 = vunpack.c.h.b16 %v276
    %v319 = vunpack.c.l.b16 %v277
    %v320 = vunpack.c.h.b16 %v277
    %v321 = vunpack.c.l.b16 %v278
    %v322 = vunpack.c.h.b16 %v278
    %v323 = vunpack.c.l.b16 %v279
    %v324 = vunpack.c.h.b16 %v279
    %v325 = vunpack.c.l.b16 %v280
    %v326 = vunpack.c.h.b16 %v280
    %v327 = vunpack.c.l.b16 %v281
    %v328 = vunpack.c.h.b16 %v281
    %v329 = vunpack.c.l.b16 %v282
    %v330 = vunpack.c.h.b16 %v282
    %v331 = vunpack.c.l.b16 %v283
    %v332 = vunpack.c.h.b16 %v283
    %v333 = vunpack.c.l.b16 %v284
    %v334 = vunpack.c.h.b16 %v284
    %v335 = vunpack.c.l.b16 %v285
    %v336 = vunpack.c.h.b16 %v285
    %v337 = vunpack.c.l.b16 %v286
    %v338 = vunpack.c.h.b16 %v286
    %v339 = vunpack.c.l.b16 %v287
    %v340 = vunpack.c.h.b16 %v287
    %v341 = vunpack.c.l.b16 %v288
    %v342 = vunpack.c.h.b16 %v288
    %v343 = vunpack.c.l.b16 %v289
    %v344 = vunpack.c.h.b16 %v289
    %v345 = vunpack.c.l.b16 %v290
    %v346 = vunpack.c.h.b16 %v290
    %v347 = vunpack.c.l.b16 %v291
    %v348 = vunpack.c.h.b16 %v291
    %v349 = vunpack.c.l.b16 %v292
    %v350 = vunpack.c.h.b16 %v292
    %v351 = vunpack.c.l.b16 %v293
    %v352 = vunpack.c.h.b16 %v293
    %v353 = vunpack.c.l.b16 %v294
    %v354 = vunpack.c.h.b16 %v294
    %v355 = vpack.c.b16 %v335, %v315
    %v356 = vpack.c.b16 %v336, %v316
    %v357 = vpack.c.b16 %v337, %v317
    %v358 = vpack.c.b16 %v338, %v318
    %v359 = vpack.c.b16 %v339, %v319
    %v360 = vpack.c.b16 %v340, %v320
    %v361 = vpack.c.b16 %v341, %v321
    %v362 = vpack.c.b16 %v342, %v322
    %v363 = vpack.c.b16 %v343, %v323
    %v364 = vpack.c.b16 %v344, %v324
    %v365 = vpack.c.b16 %v345, %v325
    %v366 = vpack.c.b16 %v346, %v326
    %v367 = vpack.c.b16 %v347, %v327
    %v368 = vpack.c.b16 %v348, %v328
    %v369 = vpack.c.b16 %v349, %v329
    %v370 = vpack.c.b16 %v350, %v330
    %v371 = vpack.c.b16 %v351, %v331
    %v372 = vpack.c.b16 %v352, %v332
    %v373 = vpack.c.b16 %v353, %v333
    %v374 = vpack.c.b16 %v354, %v334
    %vm375 = vcmask 105472
    %v377 = vsel %vm375, %v274, 0
    %vm379 = vcmask 1045504
    %vm380 = vcmask 1046528
    %v381 = vsel %vm379, 4294967295, 65535
    %v382 = vsel %vm380, %v381, 0
    %v384 = vand.u32 %v355, %v382
    %v387 = vand.u32 %v356, %v382
    %v390 = vand.u32 %v357, %v382
    %v393 = vand.u32 %v358, %v382
    %v396 = vand.u32 %v359, %v382
    %v399 = vand.u32 %v360, %v382
    %v402 = vand.u32 %v361, %v382
    %v405 = vand.u32 %v362, %v382
    %v408 = vand.u32 %v363, %v382
    %v411 = vand.u32 %v364, %v382
    %v414 = vand.u32 %v365, %v382
    %v417 = vand.u32 %v366, %v382
    %v420 = vand.u32 %v367, %v382
    %v423 = vand.u32 %v368, %v382
    %v426 = vand.u32 %v369, %v382
    %v429 = vand.u32 %v370, %v382
    %v432 = vand.u32 %v371, %v382
    %v435 = vand.u32 %v372, %v382
    %v438 = vand.u32 %v373, %v382
    %v441 = vand.u32 %v374, %v382
    %443 = vmatprep.subr.bf16.mxu0 %v387
    %444 = vmatpush1.bf16.msra.mxu0 %v384
    %445 = vmatprep.subr.bf16.mxu0 0
    %446 = vmatpush1.bf16.msra.mxu0 0
    %447 = vmatprep.subr.bf16.mxu0 0
    %448 = vmatpush1.bf16.msra.mxu0 0
    %449 = vmatprep.subr.bf16.mxu0 0
    %450 = vmatpush1.bf16.msra.mxu0 0
    %451 = vmatprep.subr.bf16.mxu0 0
    %452 = vmatpush1.bf16.msra.mxu0 0
    %453 = vmatprep.subr.bf16.mxu0 0
    %454 = vmatpush1.bf16.msra.mxu0 0
    %455 = vmatprep.subr.bf16.mxu0 0
    %456 = vmatpush1.bf16.msra.mxu0 0
    %457 = vmatprep.subr.bf16.mxu0 0
    %458 = vmatpush1.bf16.msra.mxu0 0
    %459 = vmatprep.subr.bf16.mxu0 0
    %460 = vmatpush1.bf16.msra.mxu0 0
    %461 = vmatprep.subr.bf16.mxu0 0
    %462 = vmatpush1.bf16.msra.mxu0 0
    %463 = vmatprep.subr.bf16.mxu0 0
    %464 = vmatpush1.bf16.msra.mxu0 0
    %465 = vmatprep.subr.bf16.mxu0 0
    %466 = vmatpush1.bf16.msra.mxu0 0
    %467 = vmatprep.subr.bf16.mxu0 0
    %468 = vmatpush1.bf16.msra.mxu0 0
    %469 = vmatprep.subr.bf16.mxu0 0
    %470 = vmatpush1.bf16.msra.mxu0 0
    %471 = vmatprep.subr.bf16.mxu0 0
    %472 = vmatpush1.bf16.msra.mxu0 0
    %473 = vmatprep.subr.bf16.mxu0 0
    %474 = vmatpush1.bf16.msra.mxu0 0
    %475 = vmatprep.mubr.bf16.mxu0 0
    %476 = vmatmul.mubr.bf16.gmra.mrb[0].mxu0 %v377
    %v477 = vpop.f32.mrb[0].mxu0
    %v478 = vadd.f32 0.0, %v477
    %v479 = vpop.f32.mrb[0].mxu0
    %v480 = vadd.f32 0.0, %v479
    %v481 = vpop.f32.mrb[0].mxu0
    %v482 = vpop.f32.mrb[0].mxu0
    %483 = vdwg.mxu0
    %484 = vmatprep.subr.bf16.mxu0 %v393
    %485 = vmatpush1.bf16.msra.mxu0 %v390
    %486 = vmatprep.subr.bf16.mxu0 0
    %487 = vmatpush1.bf16.msra.mxu0 0
    %488 = vmatprep.subr.bf16.mxu0 0
    %489 = vmatpush1.bf16.msra.mxu0 0
    %490 = vmatprep.subr.bf16.mxu0 0
    %491 = vmatpush1.bf16.msra.mxu0 0
    %492 = vmatprep.subr.bf16.mxu0 0
    %493 = vmatpush1.bf16.msra.mxu0 0
    %494 = vmatprep.subr.bf16.mxu0 0
    %495 = vmatpush1.bf16.msra.mxu0 0
    %496 = vmatprep.subr.bf16.mxu0 0
    %497 = vmatpush1.bf16.msra.mxu0 0
    %498 = vmatprep.subr.bf16.mxu0 0
    %499 = vmatpush1.bf16.msra.mxu0 0
    %500 = vmatprep.subr.bf16.mxu0 0
    %501 = vmatpush1.bf16.msra.mxu0 0
    %502 = vmatprep.subr.bf16.mxu0 0
    %503 = vmatpush1.bf16.msra.mxu0 0
    %504 = vmatprep.subr.bf16.mxu0 0
    %505 = vmatpush1.bf16.msra.mxu0 0
    %506 = vmatprep.subr.bf16.mxu0 0
    %507 = vmatpush1.bf16.msra.mxu0 0
    %508 = vmatprep.subr.bf16.mxu0 0
    %509 = vmatpush1.bf16.msra.mxu0 0
    %510 = vmatprep.subr.bf16.mxu0 0
    %511 = vmatpush1.bf16.msra.mxu0 0
    %512 = vmatprep.subr.bf16.mxu0 0
    %513 = vmatpush1.bf16.msra.mxu0 0
    %514 = vmatprep.subr.bf16.mxu0 0
    %515 = vmatpush1.bf16.msra.mxu0 0
    %516 = vmatprep.mubr.bf16.mxu0 0
    %517 = vmatmul.mubr.bf16.gmra.mrb[0].mxu0 %v377
    %v518 = vpop.f32.mrb[0].mxu0
    %v519 = vadd.f32 0.0, %v518
    %v520 = vpop.f32.mrb[0].mxu0
    %v521 = vadd.f32 0.0, %v520
    %v522 = vpop.f32.mrb[0].mxu0
    %v523 = vpop.f32.mrb[0].mxu0
    %524 = vdwg.mxu0
    %525 = vmatprep.subr.bf16.mxu0 %v399
    %526 = vmatpush1.bf16.msra.mxu0 %v396
    %527 = vmatprep.subr.bf16.mxu0 0
    %528 = vmatpush1.bf16.msra.mxu0 0
    %529 = vmatprep.subr.bf16.mxu0 0
    %530 = vmatpush1.bf16.msra.mxu0 0
    %531 = vmatprep.subr.bf16.mxu0 0
    %532 = vmatpush1.bf16.msra.mxu0 0
    %533 = vmatprep.subr.bf16.mxu0 0
    %534 = vmatpush1.bf16.msra.mxu0 0
    %535 = vmatprep.subr.bf16.mxu0 0
    %536 = vmatpush1.bf16.msra.mxu0 0
    %537 = vmatprep.subr.bf16.mxu0 0
    %538 = vmatpush1.bf16.msra.mxu0 0
    %539 = vmatprep.subr.bf16.mxu0 0
    %540 = vmatpush1.bf16.msra.mxu0 0
    %541 = vmatprep.subr.bf16.mxu0 0
    %542 = vmatpush1.bf16.msra.mxu0 0
    %543 = vmatprep.subr.bf16.mxu0 0
    %544 = vmatpush1.bf16.msra.mxu0 0
    %545 = vmatprep.subr.bf16.mxu0 0
    %546 = vmatpush1.bf16.msra.mxu0 0
    %547 = vmatprep.subr.bf16.mxu0 0
    %548 = vmatpush1.bf16.msra.mxu0 0
    %549 = vmatprep.subr.bf16.mxu0 0
    %550 = vmatpush1.bf16.msra.mxu0 0
    %551 = vmatprep.subr.bf16.mxu0 0
    %552 = vmatpush1.bf16.msra.mxu0 0
    %553 = vmatprep.subr.bf16.mxu0 0
    %554 = vmatpush1.bf16.msra.mxu0 0
    %555 = vmatprep.subr.bf16.mxu0 0
    %556 = vmatpush1.bf16.msra.mxu0 0
    %557 = vmatprep.mubr.bf16.mxu0 0
    %558 = vmatmul.mubr.bf16.gmra.mrb[0].mxu0 %v377
    %v559 = vpop.f32.mrb[0].mxu0
    %v560 = vadd.f32 0.0, %v559
    %v561 = vpop.f32.mrb[0].mxu0
    %v562 = vadd.f32 0.0, %v561
    %v563 = vpop.f32.mrb[0].mxu0
    %v564 = vpop.f32.mrb[0].mxu0
    %565 = vdwg.mxu0
    %566 = vmatprep.subr.bf16.mxu0 %v405
    %567 = vmatpush1.bf16.msra.mxu0 %v402
    %568 = vmatprep.subr.bf16.mxu0 0
    %569 = vmatpush1.bf16.msra.mxu0 0
    %570 = vmatprep.subr.bf16.mxu0 0
    %571 = vmatpush1.bf16.msra.mxu0 0
    %572 = vmatprep.subr.bf16.mxu0 0
    %573 = vmatpush1.bf16.msra.mxu0 0
    %574 = vmatprep.subr.bf16.mxu0 0
    %575 = vmatpush1.bf16.msra.mxu0 0
    %576 = vmatprep.subr.bf16.mxu0 0
    %577 = vmatpush1.bf16.msra.mxu0 0
    %578 = vmatprep.subr.bf16.mxu0 0
    %579 = vmatpush1.bf16.msra.mxu0 0
    %580 = vmatprep.subr.bf16.mxu0 0
    %581 = vmatpush1.bf16.msra.mxu0 0
    %582 = vmatprep.subr.bf16.mxu0 0
    %583 = vmatpush1.bf16.msra.mxu0 0
    %584 = vmatprep.subr.bf16.mxu0 0
    %585 = vmatpush1.bf16.msra.mxu0 0
    %586 = vmatprep.subr.bf16.mxu0 0
    %587 = vmatpush1.bf16.msra.mxu0 0
    %588 = vmatprep.subr.bf16.mxu0 0
    %589 = vmatpush1.bf16.msra.mxu0 0
    %590 = vmatprep.subr.bf16.mxu0 0
    %591 = vmatpush1.bf16.msra.mxu0 0
    %592 = vmatprep.subr.bf16.mxu0 0
    %593 = vmatpush1.bf16.msra.mxu0 0
    %594 = vmatprep.subr.bf16.mxu0 0
    %595 = vmatpush1.bf16.msra.mxu0 0
    %596 = vmatprep.subr.bf16.mxu0 0
    %597 = vmatpush1.bf16.msra.mxu0 0
    %598 = vmatprep.mubr.bf16.mxu0 0
    %599 = vmatmul.mubr.bf16.gmra.mrb[0].mxu0 %v377
    %v600 = vpop.f32.mrb[0].mxu0
    %v601 = vadd.f32 0.0, %v600
    %v602 = vpop.f32.mrb[0].mxu0
    %v603 = vadd.f32 0.0, %v602
    %v604 = vpop.f32.mrb[0].mxu0
    %v605 = vpop.f32.mrb[0].mxu0
    %606 = vdwg.mxu0
    %607 = vmatprep.subr.bf16.mxu0 %v411
    %608 = vmatpush1.bf16.msra.mxu0 %v408
    %609 = vmatprep.subr.bf16.mxu0 0
    %610 = vmatpush1.bf16.msra.mxu0 0
    %611 = vmatprep.subr.bf16.mxu0 0
    %612 = vmatpush1.bf16.msra.mxu0 0
    %613 = vmatprep.subr.bf16.mxu0 0
    %614 = vmatpush1.bf16.msra.mxu0 0
    %615 = vmatprep.subr.bf16.mxu0 0
    %616 = vmatpush1.bf16.msra.mxu0 0
    %617 = vmatprep.subr.bf16.mxu0 0
    %618 = vmatpush1.bf16.msra.mxu0 0
    %619 = vmatprep.subr.bf16.mxu0 0
    %620 = vmatpush1.bf16.msra.mxu0 0
    %621 = vmatprep.subr.bf16.mxu0 0
    %622 = vmatpush1.bf16.msra.mxu0 0
    %623 = vmatprep.subr.bf16.mxu0 0
    %624 = vmatpush1.bf16.msra.mxu0 0
    %625 = vmatprep.subr.bf16.mxu0 0
    %626 = vmatpush1.bf16.msra.mxu0 0
    %627 = vmatprep.subr.bf16.mxu0 0
    %628 = vmatpush1.bf16.msra.mxu0 0
    %629 = vmatprep.subr.bf16.mxu0 0
    %630 = vmatpush1.bf16.msra.mxu0 0
    %631 = vmatprep.subr.bf16.mxu0 0
    %632 = vmatpush1.bf16.msra.mxu0 0
    %633 = vmatprep.subr.bf16.mxu0 0
    %634 = vmatpush1.bf16.msra.mxu0 0
    %635 = vmatprep.subr.bf16.mxu0 0
    %636 = vmatpush1.bf16.msra.mxu0 0
    %637 = vmatprep.subr.bf16.mxu0 0
    %638 = vmatpush1.bf16.msra.mxu0 0
    %639 = vmatprep.mubr.bf16.mxu0 0
    %640 = vmatmul.mubr.bf16.gmra.mrb[0].mxu0 %v377
    %v641 = vpop.f32.mrb[0].mxu0
    %v642 = vadd.f32 0.0, %v641
    %v643 = vpop.f32.mrb[0].mxu0
    %v644 = vadd.f32 0.0, %v643
    %v645 = vpop.f32.mrb[0].mxu0
    %v646 = vpop.f32.mrb[0].mxu0
    %647 = vdwg.mxu0
    %648 = vmatprep.subr.bf16.mxu0 %v417
    %649 = vmatpush1.bf16.msra.mxu0 %v414
    %650 = vmatprep.subr.bf16.mxu0 0
    %651 = vmatpush1.bf16.msra.mxu0 0
    %652 = vmatprep.subr.bf16.mxu0 0
    %653 = vmatpush1.bf16.msra.mxu0 0
    %654 = vmatprep.subr.bf16.mxu0 0
    %655 = vmatpush1.bf16.msra.mxu0 0
    %656 = vmatprep.subr.bf16.mxu0 0
    %657 = vmatpush1.bf16.msra.mxu0 0
    %658 = vmatprep.subr.bf16.mxu0 0
    %659 = vmatpush1.bf16.msra.mxu0 0
    %660 = vmatprep.subr.bf16.mxu0 0
    %661 = vmatpush1.bf16.msra.mxu0 0
    %662 = vmatprep.subr.bf16.mxu0 0
    %663 = vmatpush1.bf16.msra.mxu0 0
    %664 = vmatprep.subr.bf16.mxu0 0
    %665 = vmatpush1.bf16.msra.mxu0 0
    %666 = vmatprep.subr.bf16.mxu0 0
    %667 = vmatpush1.bf16.msra.mxu0 0
    %668 = vmatprep.subr.bf16.mxu0 0
    %669 = vmatpush1.bf16.msra.mxu0 0
    %670 = vmatprep.subr.bf16.mxu0 0
    %671 = vmatpush1.bf16.msra.mxu0 0
    %672 = vmatprep.subr.bf16.mxu0 0
    %673 = vmatpush1.bf16.msra.mxu0 0
    %674 = vmatprep.subr.bf16.mxu0 0
    %675 = vmatpush1.bf16.msra.mxu0 0
    %676 = vmatprep.subr.bf16.mxu0 0
    %677 = vmatpush1.bf16.msra.mxu0 0
    %678 = vmatprep.subr.bf16.mxu0 0
    %679 = vmatpush1.bf16.msra.mxu0 0
    %680 = vmatprep.mubr.bf16.mxu0 0
    %681 = vmatmul.mubr.bf16.gmra.mrb[0].mxu0 %v377
    %v682 = vpop.f32.mrb[0].mxu0
    %v683 = vadd.f32 0.0, %v682
    %v684 = vpop.f32.mrb[0].mxu0
    %v685 = vadd.f32 0.0, %v684
    %v686 = vpop.f32.mrb[0].mxu0
    %v687 = vpop.f32.mrb[0].mxu0
    %688 = vdwg.mxu0
    %689 = vmatprep.subr.bf16.mxu0 %v423
    %690 = vmatpush1.bf16.msra.mxu0 %v420
    %691 = vmatprep.subr.bf16.mxu0 0
    %692 = vmatpush1.bf16.msra.mxu0 0
    %693 = vmatprep.subr.bf16.mxu0 0
    %694 = vmatpush1.bf16.msra.mxu0 0
    %695 = vmatprep.subr.bf16.mxu0 0
    %696 = vmatpush1.bf16.msra.mxu0 0
    %697 = vmatprep.subr.bf16.mxu0 0
    %698 = vmatpush1.bf16.msra.mxu0 0
    %699 = vmatprep.subr.bf16.mxu0 0
    %700 = vmatpush1.bf16.msra.mxu0 0
    %701 = vmatprep.subr.bf16.mxu0 0
    %702 = vmatpush1.bf16.msra.mxu0 0
    %703 = vmatprep.subr.bf16.mxu0 0
    %704 = vmatpush1.bf16.msra.mxu0 0
    %705 = vmatprep.subr.bf16.mxu0 0
    %706 = vmatpush1.bf16.msra.mxu0 0
    %707 = vmatprep.subr.bf16.mxu0 0
    %708 = vmatpush1.bf16.msra.mxu0 0
    %709 = vmatprep.subr.bf16.mxu0 0
    %710 = vmatpush1.bf16.msra.mxu0 0
    %711 = vmatprep.subr.bf16.mxu0 0
    %712 = vmatpush1.bf16.msra.mxu0 0
    %713 = vmatprep.subr.bf16.mxu0 0
    %714 = vmatpush1.bf16.msra.mxu0 0
    %715 = vmatprep.subr.bf16.mxu0 0
    %716 = vmatpush1.bf16.msra.mxu0 0
    %717 = vmatprep.subr.bf16.mxu0 0
    %718 = vmatpush1.bf16.msra.mxu0 0
    %719 = vmatprep.subr.bf16.mxu0 0
    %720 = vmatpush1.bf16.msra.mxu0 0
    %721 = vmatprep.mubr.bf16.mxu0 0
    %722 = vmatmul.mubr.bf16.gmra.mrb[0].mxu0 %v377
    %v723 = vpop.f32.mrb[0].mxu0
    %v724 = vadd.f32 0.0, %v723
    %v725 = vpop.f32.mrb[0].mxu0
    %v726 = vadd.f32 0.0, %v725
    %v727 = vpop.f32.mrb[0].mxu0
    %v728 = vpop.f32.mrb[0].mxu0
    %729 = vdwg.mxu0
    %730 = vmatprep.subr.bf16.mxu0 %v429
    %731 = vmatpush1.bf16.msra.mxu0 %v426
    %732 = vmatprep.subr.bf16.mxu0 0
    %733 = vmatpush1.bf16.msra.mxu0 0
    %734 = vmatprep.subr.bf16.mxu0 0
    %735 = vmatpush1.bf16.msra.mxu0 0
    %736 = vmatprep.subr.bf16.mxu0 0
    %737 = vmatpush1.bf16.msra.mxu0 0
    %738 = vmatprep.subr.bf16.mxu0 0
    %739 = vmatpush1.bf16.msra.mxu0 0
    %740 = vmatprep.subr.bf16.mxu0 0
    %741 = vmatpush1.bf16.msra.mxu0 0
    %742 = vmatprep.subr.bf16.mxu0 0
    %743 = vmatpush1.bf16.msra.mxu0 0
    %744 = vmatprep.subr.bf16.mxu0 0
    %745 = vmatpush1.bf16.msra.mxu0 0
    %746 = vmatprep.subr.bf16.mxu0 0
    %747 = vmatpush1.bf16.msra.mxu0 0
    %748 = vmatprep.subr.bf16.mxu0 0
    %749 = vmatpush1.bf16.msra.mxu0 0
    %750 = vmatprep.subr.bf16.mxu0 0
    %751 = vmatpush1.bf16.msra.mxu0 0
    %752 = vmatprep.subr.bf16.mxu0 0
    %753 = vmatpush1.bf16.msra.mxu0 0
    %754 = vmatprep.subr.bf16.mxu0 0
    %755 = vmatpush1.bf16.msra.mxu0 0
    %756 = vmatprep.subr.bf16.mxu0 0
    %757 = vmatpush1.bf16.msra.mxu0 0
    %758 = vmatprep.subr.bf16.mxu0 0
    %759 = vmatpush1.bf16.msra.mxu0 0
    %760 = vmatprep.subr.bf16.mxu0 0
    %761 = vmatpush1.bf16.msra.mxu0 0
    %762 = vmatprep.mubr.bf16.mxu0 0
    %763 = vmatmul.mubr.bf16.gmra.mrb[0].mxu0 %v377
    %v764 = vpop.f32.mrb[0].mxu0
    %v765 = vadd.f32 0.0, %v764
    %v766 = vpop.f32.mrb[0].mxu0
    %v767 = vadd.f32 0.0, %v766
    %v768 = vpop.f32.mrb[0].mxu0
    %v769 = vpop.f32.mrb[0].mxu0
    %770 = vdwg.mxu0
    %771 = vmatprep.subr.bf16.mxu0 %v435
    %772 = vmatpush1.bf16.msra.mxu0 %v432
    %773 = vmatprep.subr.bf16.mxu0 0
    %774 = vmatpush1.bf16.msra.mxu0 0
    %775 = vmatprep.subr.bf16.mxu0 0
    %776 = vmatpush1.bf16.msra.mxu0 0
    %777 = vmatprep.subr.bf16.mxu0 0
    %778 = vmatpush1.bf16.msra.mxu0 0
    %779 = vmatprep.subr.bf16.mxu0 0
    %780 = vmatpush1.bf16.msra.mxu0 0
    %781 = vmatprep.subr.bf16.mxu0 0
    %782 = vmatpush1.bf16.msra.mxu0 0
    %783 = vmatprep.subr.bf16.mxu0 0
    %784 = vmatpush1.bf16.msra.mxu0 0
    %785 = vmatprep.subr.bf16.mxu0 0
    %786 = vmatpush1.bf16.msra.mxu0 0
    %787 = vmatprep.subr.bf16.mxu0 0
    %788 = vmatpush1.bf16.msra.mxu0 0
    %789 = vmatprep.subr.bf16.mxu0 0
    %790 = vmatpush1.bf16.msra.mxu0 0
    %791 = vmatprep.subr.bf16.mxu0 0
    %792 = vmatpush1.bf16.msra.mxu0 0
    %793 = vmatprep.subr.bf16.mxu0 0
    %794 = vmatpush1.bf16.msra.mxu0 0
    %795 = vmatprep.subr.bf16.mxu0 0
    %796 = vmatpush1.bf16.msra.mxu0 0
    %797 = vmatprep.subr.bf16.mxu0 0
    %798 = vmatpush1.bf16.msra.mxu0 0
    %799 = vmatprep.subr.bf16.mxu0 0
    %800 = vmatpush1.bf16.msra.mxu0 0
    %801 = vmatprep.subr.bf16.mxu0 0
    %802 = vmatpush1.bf16.msra.mxu0 0
    %803 = vmatprep.mubr.bf16.mxu0 0
    %804 = vmatmul.mubr.bf16.gmra.mrb[0].mxu0 %v377
    %v805 = vpop.f32.mrb[0].mxu0
    %v806 = vadd.f32 0.0, %v805
    %v807 = vpop.f32.mrb[0].mxu0
    %v808 = vadd.f32 0.0, %v807
    %v809 = vpop.f32.mrb[0].mxu0
    %v810 = vpop.f32.mrb[0].mxu0
    %811 = vdwg.mxu0
    %812 = vmatprep.subr.bf16.mxu0 %v441
    %813 = vmatpush1.bf16.msra.mxu0 %v438
    %814 = vmatprep.subr.bf16.mxu0 0
    %815 = vmatpush1.bf16.msra.mxu0 0
    %816 = vmatprep.subr.bf16.mxu0 0
    %817 = vmatpush1.bf16.msra.mxu0 0
    %818 = vmatprep.subr.bf16.mxu0 0
    %819 = vmatpush1.bf16.msra.mxu0 0
    %820 = vmatprep.subr.bf16.mxu0 0
    %821 = vmatpush1.bf16.msra.mxu0 0
    %822 = vmatprep.subr.bf16.mxu0 0
    %823 = vmatpush1.bf16.msra.mxu0 0
    %824 = vmatprep.subr.bf16.mxu0 0
    %825 = vmatpush1.bf16.msra.mxu0 0
    %826 = vmatprep.subr.bf16.mxu0 0
    %827 = vmatpush1.bf16.msra.mxu0 0
    %828 = vmatprep.subr.bf16.mxu0 0
    %829 = vmatpush1.bf16.msra.mxu0 0
    %830 = vmatprep.subr.bf16.mxu0 0
    %831 = vmatpush1.bf16.msra.mxu0 0
    %832 = vmatprep.subr.bf16.mxu0 0
    %833 = vmatpush1.bf16.msra.mxu0 0
    %834 = vmatprep.subr.bf16.mxu0 0
    %835 = vmatpush1.bf16.msra.mxu0 0
    %836 = vmatprep.subr.bf16.mxu0 0
    %837 = vmatpush1.bf16.msra.mxu0 0
    %838 = vmatprep.subr.bf16.mxu0 0
    %839 = vmatpush1.bf16.msra.mxu0 0
    %840 = vmatprep.subr.bf16.mxu0 0
    %841 = vmatpush1.bf16.msra.mxu0 0
    %842 = vmatprep.subr.bf16.mxu0 0
    %843 = vmatpush1.bf16.msra.mxu0 0
    %844 = vmatprep.mubr.bf16.mxu0 0
    %845 = vmatmul.mubr.bf16.gmra.mrb[0].mxu0 %v377
    %v846 = vpop.f32.mrb[0].mxu0
    %v847 = vadd.f32 0.0, %v846
    %v848 = vpop.f32.mrb[0].mxu0
    %v849 = vadd.f32 0.0, %v848
    %v850 = vpop.f32.mrb[0].mxu0
    %v851 = vpop.f32.mrb[0].mxu0
    %852 = vdwg.mxu0
    %v853 = vmax.f32 %v478, 0.0
    %v854 = vmax.f32 %v480, 0.0
    %v855 = vmax.f32 %v519, 0.0
    %v856 = vmax.f32 %v521, 0.0
    %v857 = vmax.f32 %v560, 0.0
    %v858 = vmax.f32 %v562, 0.0
    %v859 = vmax.f32 %v601, 0.0
    %v860 = vmax.f32 %v603, 0.0
    %v861 = vmax.f32 %v642, 0.0
    %v862 = vmax.f32 %v644, 0.0
    %v863 = vmax.f32 %v683, 0.0
    %v864 = vmax.f32 %v685, 0.0
    %v865 = vmax.f32 %v724, 0.0
    %v866 = vmax.f32 %v726, 0.0
    %v867 = vmax.f32 %v765, 0.0
    %v868 = vmax.f32 %v767, 0.0
    %v869 = vmax.f32 %v806, 0.0
    %v870 = vmax.f32 %v808, 0.0
    %v871 = vmax.f32 %v847, 0.0
    %v872 = vmax.f32 %v849, 0.0
    %v873 = vpack.c.bf16 %v853, %v853
    %v874 = vpack.c.bf16 %v854, %v854
    %v875 = vpack.c.bf16 %v855, %v855
    %v876 = vpack.c.bf16 %v856, %v856
    %v877 = vpack.c.bf16 %v857, %v857
    %v878 = vpack.c.bf16 %v858, %v858
    %v879 = vpack.c.bf16 %v859, %v859
    %v880 = vpack.c.bf16 %v860, %v860
    %v881 = vpack.c.bf16 %v861, %v861
    %v882 = vpack.c.bf16 %v862, %v862
    %v883 = vpack.c.bf16 %v863, %v863
    %v884 = vpack.c.bf16 %v864, %v864
    %v885 = vpack.c.bf16 %v865, %v865
    %v886 = vpack.c.bf16 %v866, %v866
    %v887 = vpack.c.bf16 %v867, %v867
    %v888 = vpack.c.bf16 %v868, %v868
    %v889 = vpack.c.bf16 %v869, %v869
    %v890 = vpack.c.bf16 %v870, %v870
    %v891 = vpack.c.bf16 %v871, %v871
    %v892 = vpack.c.bf16 %v872, %v872
    %v913 = vunpack.c.l.b16 %v873
    %v914 = vunpack.c.l.b16 %v874
    %v915 = vunpack.c.l.b16 %v875
    %v916 = vunpack.c.l.b16 %v876
    %v917 = vunpack.c.l.b16 %v877
    %v918 = vunpack.c.l.b16 %v878
    %v919 = vunpack.c.l.b16 %v879
    %v920 = vunpack.c.l.b16 %v880
    %v921 = vunpack.c.l.b16 %v881
    %v922 = vunpack.c.l.b16 %v882
    %v923 = vunpack.c.l.b16 %v883
    %v924 = vunpack.c.l.b16 %v884
    %v925 = vunpack.c.l.b16 %v885
    %v926 = vunpack.c.l.b16 %v886
    %v927 = vunpack.c.l.b16 %v887
    %v928 = vunpack.c.l.b16 %v888
    %v929 = vunpack.c.l.b16 %v889
    %v930 = vunpack.c.l.b16 %v890
    %v931 = vunpack.c.l.b16 %v891
    %v932 = vunpack.c.l.b16 %v892
    %v933 = vpack.c.b16 %v914, %v913
    %v934 = vpack.c.b16 %v916, %v915
    %v935 = vpack.c.b16 %v918, %v917
    %v936 = vpack.c.b16 %v920, %v919
    %v937 = vpack.c.b16 %v922, %v921
    %v938 = vpack.c.b16 %v924, %v923
    %v939 = vpack.c.b16 %v926, %v925
    %v940 = vpack.c.b16 %v928, %v927
    %v941 = vpack.c.b16 %v930, %v929
    %v942 = vpack.c.b16 %v932, %v931
    %953 = vst [vmem:[#allocation3] sm:$0xff] %v933
    %954 = vst [vmem:[#allocation3 + $0x8] sm:$0xff] %v934
    %955 = vst [vmem:[#allocation3 + $0x10] sm:$0xff] %v935
    %956 = vst [vmem:[#allocation3 + $0x18] sm:$0xff] %v936
    %957 = vst [vmem:[#allocation3 + $0x20] sm:$0xff] %v937
    %958 = vst [vmem:[#allocation3 + $0x28] sm:$0xff] %v938
    %959 = vst [vmem:[#allocation3 + $0x30] sm:$0xff] %v939
    %960 = vst [vmem:[#allocation3 + $0x38] sm:$0xff] %v940
    %961 = vst [vmem:[#allocation3 + $0x40] sm:$0xff] %v941
    %962 = vst [vmem:[#allocation3 + $0x48] sm:$0xff] %v942
    %963 = vst [vmem:[#allocation3 + $0x50] sm:$0xf] 0
    %v964 = vld [vmem:[#allocation3] sm:$0xff]
    %v965 = vld [vmem:[#allocation3 + $0x8] sm:$0xff]
    %v966 = vld [vmem:[#allocation3 + $0x10] sm:$0xff]
    %v967 = vld [vmem:[#allocation3 + $0x18] sm:$0xff]
    %v968 = vld [vmem:[#allocation3 + $0x20] sm:$0xff]
    %v969 = vld [vmem:[#allocation3 + $0x28] sm:$0xff]
    %v970 = vld [vmem:[#allocation3 + $0x30] sm:$0xff]
    %v971 = vld [vmem:[#allocation3 + $0x38] sm:$0xff]
    %v972 = vld [vmem:[#allocation3 + $0x40] sm:$0xff]
    %v973 = vld [vmem:[#allocation3 + $0x48] sm:$0xff]
    %v974 = vld [vmem:[#allocation3 + $0x28] sm:$0xff]
    %v975 = vld [vmem:[#allocation3 + $0x30] sm:$0xff]
    %v976 = vld [vmem:[#allocation3 + $0x38] sm:$0xff]
    %v977 = vld [vmem:[#allocation3 + $0x40] sm:$0xff]
    %v978 = vld [vmem:[#allocation3 + $0x48] sm:$0xff]
    %979 = vst [vmem:[#allocation4] sm:$0xff] %v964
    %980 = vst [vmem:[#allocation4 + $0x8] sm:$0xff] %v965
    %981 = vst [vmem:[#allocation4 + $0x20] sm:$0xff] %v969
    %982 = vst [vmem:[#allocation4 + $0x28] sm:$0xff] %v970
    %986 = vrot.lane.b32.xlu0 %v964, 127
    %v987 = vpop.permute.xlu0 %986
    %988 = vrot.lane.b32.xlu0 %v965, 127
    %v989 = vpop.permute.xlu0 %988
    %990 = vrot.lane.b32.xlu0 %v966, 127
    %v991 = vpop.permute.xlu0 %990
    %v992 = vrot.slane %v987, 4
    %v993 = vrot.slane %v989, 4
    %v994 = vrot.slane %v991, 4
    %v995 = vsel %vm90, %v992, %v993
    %v996 = vsel %vm92, %v987, %v995
    %v997 = vsel %vm90, %v993, %v994
    %v998 = vsel %vm92, %v989, %v997
    %1001 = vst [vmem:[#allocation4 + $0x40] sm:$0xff] %v996
    %1002 = vst [vmem:[#allocation4 + $0x48] sm:$0xff] %v998
    %1006 = vrot.lane.b32.xlu0 %v974, 127
    %v1007 = vpop.permute.xlu0 %1006
    %1008 = vrot.lane.b32.xlu0 %v975, 127
    %v1009 = vpop.permute.xlu0 %1008
    %1010 = vrot.lane.b32.xlu0 %v976, 127
    %v1011 = vpop.permute.xlu0 %1010
    %v1012 = vrot.slane %v1007, 4
    %v1013 = vrot.slane %v1009, 4
    %v1014 = vrot.slane %v1011, 4
    %v1015 = vsel %vm90, %v1012, %v1013
    %v1016 = vsel %vm92, %v1007, %v1015
    %v1017 = vsel %vm90, %v1013, %v1014
    %v1018 = vsel %vm92, %v1009, %v1017
    %1021 = vst [vmem:[#allocation4 + $0x60] sm:$0xff] %v1016
    %1022 = vst [vmem:[#allocation4 + $0x68] sm:$0xff] %v1018
    %1023 = vrot.lane.b32.xlu0 %v964, 126
    %v1024 = vpop.permute.xlu0 %1023
    %1025 = vrot.lane.b32.xlu0 %v965, 126
    %v1026 = vpop.permute.xlu0 %1025
    %1027 = vrot.lane.b32.xlu0 %v966, 126
    %v1028 = vpop.permute.xlu0 %1027
    %v1029 = vrot.slane %v1024, 4
    %v1030 = vrot.slane %v1026, 4
    %v1031 = vrot.slane %v1028, 4
    %v1032 = vsel %vm90, %v1029, %v1030
    %vm1033 = vcmask 1031168
    %v1034 = vsel %vm1033, %v1024, %v1032
    %v1035 = vsel %vm90, %v1030, %v1031
    %v1036 = vsel %vm1033, %v1026, %v1035
    %1039 = vst [vmem:[#allocation4 + $0x80] sm:$0xff] %v1034
    %1040 = vst [vmem:[#allocation4 + $0x88] sm:$0xff] %v1036
    %v1043 = vrot.slane %v966, 4
    %v1044 = vrot.slane %v967, 4
    %v1045 = vrot.slane %v968, 4
    %v1046 = vsel %vm90, %v1043, %v1044
    %v1047 = vsel %vm90, %v1044, %v1045
    %1050 = vst [vmem:[#allocation4 + $0x10] sm:$0xff] %v1046
    %1051 = vst [vmem:[#allocation4 + $0x18] sm:$0xff] %v1047
    %v1055 = vrot.slane %v971, 4
    %v1056 = vrot.slane %v972, 4
    %v1057 = vrot.slane %v973, 4
    %v1058 = vsel %vm90, %v1055, %v1056
    %v1059 = vsel %vm90, %v1056, %v1057
    %1062 = vst [vmem:[#allocation4 + $0x30] sm:$0xff] %v1058
    %1063 = vst [vmem:[#allocation4 + $0x38] sm:$0xff] %v1059
    %1064 = vrot.lane.b32.xlu0 %v967, 127
    %v1065 = vpop.permute.xlu0 %1064
    %1066 = vrot.lane.b32.xlu0 %v968, 127
    %v1067 = vpop.permute.xlu0 %1066
    %v1068 = vrot.slane %v1065, 4
    %v1069 = vrot.slane %v1067, 4
    %v1070 = vsel %vm90, %v994, %v1068
    %v1071 = vsel %vm92, %v1070, %v1065
    %v1072 = vsel %vm90, %v1068, %v1069
    %v1073 = vsel %vm92, %v1072, %v1067
    %1076 = vst [vmem:[#allocation4 + $0x50] sm:$0xff] %v1071
    %1077 = vst [vmem:[#allocation4 + $0x58] sm:$0xff] %v1073
    %1080 = vrot.lane.b32.xlu0 %v977, 127
    %v1081 = vpop.permute.xlu0 %1080
    %1082 = vrot.lane.b32.xlu0 %v978, 127
    %v1083 = vpop.permute.xlu0 %1082
    %v1084 = vrot.slane %v1081, 4
    %v1085 = vrot.slane %v1083, 4
    %v1086 = vsel %vm90, %v1014, %v1084
    %v1087 = vsel %vm92, %v1086, %v1081
    %v1088 = vsel %vm90, %v1084, %v1085
    %v1089 = vsel %vm92, %v1088, %v1083
    %1092 = vst [vmem:[#allocation4 + $0x70] sm:$0xff] %v1087
    %1093 = vst [vmem:[#allocation4 + $0x78] sm:$0xff] %v1089
    %1094 = vrot.lane.b32.xlu0 %v967, 126
    %v1095 = vpop.permute.xlu0 %1094
    %1096 = vrot.lane.b32.xlu0 %v968, 126
    %v1097 = vpop.permute.xlu0 %1096
    %v1098 = vrot.slane %v1095, 4
    %v1099 = vrot.slane %v1097, 4
    %v1100 = vsel %vm90, %v1031, %v1098
    %v1101 = vsel %vm1033, %v1100, %v1095
    %v1102 = vsel %vm90, %v1098, %v1099
    %v1103 = vsel %vm1033, %v1102, %v1097
    %1106 = vst [vmem:[#allocation4 + $0x90] sm:$0xff] %v1101
    %1107 = vst [vmem:[#allocation4 + $0x98] sm:$0xff] %v1103
    %vm1108 = vcmask 1040384
    %vm1109 = vsmask.f32 256
    %vm1110 = vmand %vm1108, %vm1109
    %vm1111 = vcmask 1044484
    %vm1112 = vsmask.f32 4352
    %vm1113 = vmand %vm1111, %vm1112
    %vm1114 = vmor %vm1113, %vm1110
    %v1115 = vld [vmem:[#allocation4 + $0xa0] sm:$0x11]
    %v1116 = vsel %vm1114, 1065369472, %v1115
    %1117 = vst [vmem:[#allocation4 + $0xa0] sm:$0x11] %v1116
    %v1118 = vld [vmem:[#allocation4 + $0xa8] sm:$0x11]
    %v1119 = vsel %vm1114, 1065369472, %v1118
    %1120 = vst [vmem:[#allocation4 + $0xa8] sm:$0x11] %v1119
    %v1121 = vld [vmem:[#allocation4 + $0xb0] sm:$0x11]
    %v1122 = vsel %vm1114, 1065369472, %v1121
    %1123 = vst [vmem:[#allocation4 + $0xb0] sm:$0x11] %v1122
    %v1124 = vld [vmem:[#allocation4 + $0xb8] sm:$0x11]
    %v1125 = vsel %vm1114, 1065369472, %v1124
    %1126 = vst [vmem:[#allocation4 + $0xb8] sm:$0x11] %v1125
    %v1127 = vld [vmem:[%s2] sm:$0xf]
    %v1128 = vld [vmem:[%s2 + $0x4] sm:$0xf]
    %v1129 = vld [vmem:[#allocation4] sm:$0xff]
    %v1130 = vld [vmem:[#allocation4 + $0x8] sm:$0xff]
    %v1131 = vld [vmem:[#allocation4 + $0x10] sm:$0xff]
    %v1132 = vld [vmem:[#allocation4 + $0x18] sm:$0xff]
    %v1133 = vld [vmem:[#allocation4 + $0x20] sm:$0xff]
    %v1134 = vld [vmem:[#allocation4 + $0x28] sm:$0xff]
    %v1135 = vld [vmem:[#allocation4 + $0x30] sm:$0xff]
    %v1136 = vld [vmem:[#allocation4 + $0x38] sm:$0xff]
    %v1137 = vld [vmem:[#allocation4 + $0x40] sm:$0xff]
    %v1138 = vld [vmem:[#allocation4 + $0x48] sm:$0xff]
    %v1139 = vld [vmem:[#allocation4 + $0x50] sm:$0xff]
    %v1140 = vld [vmem:[#allocation4 + $0x58] sm:$0xff]
    %v1141 = vld [vmem:[#allocation4 + $0x60] sm:$0xff]
    %v1142 = vld [vmem:[#allocation4 + $0x68] sm:$0xff]
    %v1143 = vld [vmem:[#allocation4 + $0x70] sm:$0xff]
    %v1144 = vld [vmem:[#allocation4 + $0x78] sm:$0xff]
    %v1145 = vld [vmem:[#allocation4 + $0x80] sm:$0xff]
    %v1146 = vld [vmem:[#allocation4 + $0x88] sm:$0xff]
    %v1147 = vld [vmem:[#allocation4 + $0x90] sm:$0xff]
    %v1148 = vld [vmem:[#allocation4 + $0x98] sm:$0xff]
    %v1149 = vld [vmem:[#allocation4 + $0xa0] sm:$0x11]
    %v1150 = vld [vmem:[#allocation4 + $0xa8] sm:$0x11]
    %v1151 = vld [vmem:[#allocation4 + $0xb0] sm:$0x11]
    %v1152 = vld [vmem:[#allocation4 + $0xb8] sm:$0x11]
    %v1155 = vunpack.c.l.b16 %v1127
    %v1156 = vunpack.c.l.b16 %v1128
    %v1157 = vpack.c.b16 %v1156, %v1155
    %v1182 = vunpack.c.l.b16 %v1129
    %v1183 = vunpack.c.h.b16 %v1129
    %v1184 = vunpack.c.l.b16 %v1130
    %v1185 = vunpack.c.h.b16 %v1130
    %v1186 = vunpack.c.l.b16 %v1131
    %v1187 = vunpack.c.h.b16 %v1131
    %v1188 = vunpack.c.l.b16 %v1132
    %v1189 = vunpack.c.h.b16 %v1132
    %v1190 = vunpack.c.l.b16 %v1133
    %v1191 = vunpack.c.h.b16 %v1133
    %v1192 = vunpack.c.l.b16 %v1134
    %v1193 = vunpack.c.h.b16 %v1134
    %v1194 = vunpack.c.l.b16 %v1135
    %v1195 = vunpack.c.h.b16 %v1135
    %v1196 = vunpack.c.l.b16 %v1136
    %v1197 = vunpack.c.h.b16 %v1136
    %v1198 = vunpack.c.l.b16 %v1137
    %v1199 = vunpack.c.h.b16 %v1137
    %v1200 = vunpack.c.l.b16 %v1138
    %v1201 = vunpack.c.h.b16 %v1138
    %v1202 = vunpack.c.l.b16 %v1139
    %v1203 = vunpack.c.h.b16 %v1139
    %v1204 = vunpack.c.l.b16 %v1140
    %v1205 = vunpack.c.h.b16 %v1140
    %v1206 = vunpack.c.l.b16 %v1141
    %v1207 = vunpack.c.h.b16 %v1141
    %v1208 = vunpack.c.l.b16 %v1142
    %v1209 = vunpack.c.h.b16 %v1142
    %v1210 = vunpack.c.l.b16 %v1143
    %v1211 = vunpack.c.h.b16 %v1143
    %v1212 = vunpack.c.l.b16 %v1144
    %v1213 = vunpack.c.h.b16 %v1144
    %v1214 = vunpack.c.l.b16 %v1145
    %v1215 = vunpack.c.h.b16 %v1145
    %v1216 = vunpack.c.l.b16 %v1146
    %v1217 = vunpack.c.h.b16 %v1146
    %v1218 = vunpack.c.l.b16 %v1147
    %v1219 = vunpack.c.h.b16 %v1147
    %v1220 = vunpack.c.l.b16 %v1148
    %v1221 = vunpack.c.h.b16 %v1148
    %v1222 = vunpack.c.l.b16 %v1149
    %v1223 = vunpack.c.h.b16 %v1149
    %v1224 = vunpack.c.l.b16 %v1150
    %v1225 = vunpack.c.h.b16 %v1150
    %v1226 = vunpack.c.l.b16 %v1151
    %v1227 = vunpack.c.h.b16 %v1151
    %v1228 = vunpack.c.l.b16 %v1152
    %v1229 = vunpack.c.h.b16 %v1152
    %v1230 = vpack.c.b16 %v1190, %v1182
    %v1231 = vpack.c.b16 %v1191, %v1183
    %v1232 = vpack.c.b16 %v1192, %v1184
    %v1233 = vpack.c.b16 %v1193, %v1185
    %v1234 = vpack.c.b16 %v1194, %v1186
    %v1235 = vpack.c.b16 %v1195, %v1187
    %v1236 = vpack.c.b16 %v1196, %v1188
    %v1237 = vpack.c.b16 %v1197, %v1189
    %v1238 = vpack.c.b16 %v1206, %v1198
    %v1239 = vpack.c.b16 %v1207, %v1199
    %v1240 = vpack.c.b16 %v1208, %v1200
    %v1241 = vpack.c.b16 %v1209, %v1201
    %v1242 = vpack.c.b16 %v1210, %v1202
    %v1243 = vpack.c.b16 %v1211, %v1203
    %v1244 = vpack.c.b16 %v1212, %v1204
    %v1245 = vpack.c.b16 %v1213, %v1205
    %v1246 = vpack.c.b16 %v1222, %v1214
    %v1247 = vpack.c.b16 %v1223, %v1215
    %v1248 = vpack.c.b16 %v1224, %v1216
    %v1249 = vpack.c.b16 %v1225, %v1217
    %v1250 = vpack.c.b16 %v1226, %v1218
    %v1251 = vpack.c.b16 %v1227, %v1219
    %v1252 = vpack.c.b16 %v1228, %v1220
    %v1253 = vpack.c.b16 %v1229, %v1221
    %vm1270 = vcmask 334848
    %v1272 = vsel %vm1270, %v1157, 0
    %vm1274 = vcmask 1043456
    %vm1275 = vcmask 1044480
    %v1276 = vsel %vm1274, 4294967295, 65535
    %v1277 = vsel %vm1275, %v1276, 0
    %v1279 = vand.u32 %v1246, %v1277
    %v1282 = vand.u32 %v1247, %v1277
    %v1285 = vand.u32 %v1248, %v1277
    %v1288 = vand.u32 %v1249, %v1277
    %v1291 = vand.u32 %v1250, %v1277
    %v1294 = vand.u32 %v1251, %v1277
    %v1297 = vand.u32 %v1252, %v1277
    %v1300 = vand.u32 %v1253, %v1277
    %1302 = vmatprep.subr.bf16.mxu0 %v1231
    %1303 = vmatpush1.bf16.msra.mxu0 %v1230
    %1304 = vmatprep.subr.bf16.mxu0 %v1239
    %1305 = vmatpush1.bf16.msra.mxu0 %v1238
    %1306 = vmatprep.subr.bf16.mxu0 %v1282
    %1307 = vmatpush1.bf16.msra.mxu0 %v1279
    %1308 = vmatprep.subr.bf16.mxu0 0
    %1309 = vmatpush1.bf16.msra.mxu0 0
    %1310 = vmatprep.subr.bf16.mxu0 0
    %1311 = vmatpush1.bf16.msra.mxu0 0
    %1312 = vmatprep.subr.bf16.mxu0 0
    %1313 = vmatpush1.bf16.msra.mxu0 0
    %1314 = vmatprep.subr.bf16.mxu0 0
    %1315 = vmatpush1.bf16.msra.mxu0 0
    %1316 = vmatprep.subr.bf16.mxu0 0
    %1317 = vmatpush1.bf16.msra.mxu0 0
    %1318 = vmatprep.subr.bf16.mxu0 0
    %1319 = vmatpush1.bf16.msra.mxu0 0
    %1320 = vmatprep.subr.bf16.mxu0 0
    %1321 = vmatpush1.bf16.msra.mxu0 0
    %1322 = vmatprep.subr.bf16.mxu0 0
    %1323 = vmatpush1.bf16.msra.mxu0 0
    %1324 = vmatprep.subr.bf16.mxu0 0
    %1325 = vmatpush1.bf16.msra.mxu0 0
    %1326 = vmatprep.subr.bf16.mxu0 0
    %1327 = vmatpush1.bf16.msra.mxu0 0
    %1328 = vmatprep.subr.bf16.mxu0 0
    %1329 = vmatpush1.bf16.msra.mxu0 0
    %1330 = vmatprep.subr.bf16.mxu0 0
    %1331 = vmatpush1.bf16.msra.mxu0 0
    %1332 = vmatprep.subr.bf16.mxu0 0
    %1333 = vmatpush1.bf16.msra.mxu0 0
    %1334 = vmatprep.mubr.bf16.mxu0 0
    %1335 = vmatmul.mubr.bf16.gmra.mrb[0].mxu0 %v1272
    %v1336 = vpop.f32.mrb[0].mxu0
    %v1337 = vadd.f32 0.0, %v1336
    %v1338 = vpop.f32.mrb[0].mxu0
    %v1339 = vadd.f32 0.0, %v1338
    %v1340 = vpop.f32.mrb[0].mxu0
    %v1341 = vadd.f32 0.0, %v1340
    %v1342 = vpop.f32.mrb[0].mxu0
    %v1343 = vadd.f32 0.0, %v1342
    %1344 = vdwg.mxu0
    %1345 = vmatprep.subr.bf16.mxu0 %v1233
    %1346 = vmatpush1.bf16.msra.mxu0 %v1232
    %1347 = vmatprep.subr.bf16.mxu0 %v1241
    %1348 = vmatpush1.bf16.msra.mxu0 %v1240
    %1349 = vmatprep.subr.bf16.mxu0 %v1288
    %1350 = vmatpush1.bf16.msra.mxu0 %v1285
    %1351 = vmatprep.subr.bf16.mxu0 0
    %1352 = vmatpush1.bf16.msra.mxu0 0
    %1353 = vmatprep.subr.bf16.mxu0 0
    %1354 = vmatpush1.bf16.msra.mxu0 0
    %1355 = vmatprep.subr.bf16.mxu0 0
    %1356 = vmatpush1.bf16.msra.mxu0 0
    %1357 = vmatprep.subr.bf16.mxu0 0
    %1358 = vmatpush1.bf16.msra.mxu0 0
    %1359 = vmatprep.subr.bf16.mxu0 0
    %1360 = vmatpush1.bf16.msra.mxu0 0
    %1361 = vmatprep.subr.bf16.mxu0 0
    %1362 = vmatpush1.bf16.msra.mxu0 0
    %1363 = vmatprep.subr.bf16.mxu0 0
    %1364 = vmatpush1.bf16.msra.mxu0 0
    %1365 = vmatprep.subr.bf16.mxu0 0
    %1366 = vmatpush1.bf16.msra.mxu0 0
    %1367 = vmatprep.subr.bf16.mxu0 0
    %1368 = vmatpush1.bf16.msra.mxu0 0
    %1369 = vmatprep.subr.bf16.mxu0 0
    %1370 = vmatpush1.bf16.msra.mxu0 0
    %1371 = vmatprep.subr.bf16.mxu0 0
    %1372 = vmatpush1.bf16.msra.mxu0 0
    %1373 = vmatprep.subr.bf16.mxu0 0
    %1374 = vmatpush1.bf16.msra.mxu0 0
    %1375 = vmatprep.subr.bf16.mxu0 0
    %1376 = vmatpush1.bf16.msra.mxu0 0
    %1377 = vmatprep.mubr.bf16.mxu0 0
    %1378 = vmatmul.mubr.bf16.gmra.mrb[0].mxu0 %v1272
    %v1379 = vpop.f32.mrb[0].mxu0
    %v1380 = vadd.f32 0.0, %v1379
    %v1381 = vpop.f32.mrb[0].mxu0
    %v1382 = vadd.f32 0.0, %v1381
    %v1383 = vpop.f32.mrb[0].mxu0
    %v1384 = vadd.f32 0.0, %v1383
    %v1385 = vpop.f32.mrb[0].mxu0
    %v1386 = vadd.f32 0.0, %v1385
    %1387 = vdwg.mxu0
    %1388 = vmatprep.subr.bf16.mxu0 %v1235
    %1389 = vmatpush1.bf16.msra.mxu0 %v1234
    %1390 = vmatprep.subr.bf16.mxu0 %v1243
    %1391 = vmatpush1.bf16.msra.mxu0 %v1242
    %1392 = vmatprep.subr.bf16.mxu0 %v1294
    %1393 = vmatpush1.bf16.msra.mxu0 %v1291
    %1394 = vmatprep.subr.bf16.mxu0 0
    %1395 = vmatpush1.bf16.msra.mxu0 0
    %1396 = vmatprep.subr.bf16.mxu0 0
    %1397 = vmatpush1.bf16.msra.mxu0 0
    %1398 = vmatprep.subr.bf16.mxu0 0
    %1399 = vmatpush1.bf16.msra.mxu0 0
    %1400 = vmatprep.subr.bf16.mxu0 0
    %1401 = vmatpush1.bf16.msra.mxu0 0
    %1402 = vmatprep.subr.bf16.mxu0 0
    %1403 = vmatpush1.bf16.msra.mxu0 0
    %1404 = vmatprep.subr.bf16.mxu0 0
    %1405 = vmatpush1.bf16.msra.mxu0 0
    %1406 = vmatprep.subr.bf16.mxu0 0
    %1407 = vmatpush1.bf16.msra.mxu0 0
    %1408 = vmatprep.subr.bf16.mxu0 0
    %1409 = vmatpush1.bf16.msra.mxu0 0
    %1410 = vmatprep.subr.bf16.mxu0 0
    %1411 = vmatpush1.bf16.msra.mxu0 0
    %1412 = vmatprep.subr.bf16.mxu0 0
    %1413 = vmatpush1.bf16.msra.mxu0 0
    %1414 = vmatprep.subr.bf16.mxu0 0
    %1415 = vmatpush1.bf16.msra.mxu0 0
    %1416 = vmatprep.subr.bf16.mxu0 0
    %1417 = vmatpush1.bf16.msra.mxu0 0
    %1418 = vmatprep.subr.bf16.mxu0 0
    %1419 = vmatpush1.bf16.msra.mxu0 0
    %1420 = vmatprep.mubr.bf16.mxu0 0
    %1421 = vmatmul.mubr.bf16.gmra.mrb[0].mxu0 %v1272
    %v1422 = vpop.f32.mrb[0].mxu0
    %v1423 = vadd.f32 0.0, %v1422
    %v1424 = vpop.f32.mrb[0].mxu0
    %v1425 = vadd.f32 0.0, %v1424
    %v1426 = vpop.f32.mrb[0].mxu0
    %v1427 = vadd.f32 0.0, %v1426
    %v1428 = vpop.f32.mrb[0].mxu0
    %v1429 = vadd.f32 0.0, %v1428
    %1430 = vdwg.mxu0
    %1431 = vmatprep.subr.bf16.mxu0 %v1237
    %1432 = vmatpush1.bf16.msra.mxu0 %v1236
    %1433 = vmatprep.subr.bf16.mxu0 %v1245
    %1434 = vmatpush1.bf16.msra.mxu0 %v1244
    %1435 = vmatprep.subr.bf16.mxu0 %v1300
    %1436 = vmatpush1.bf16.msra.mxu0 %v1297
    %1437 = vmatprep.subr.bf16.mxu0 0
    %1438 = vmatpush1.bf16.msra.mxu0 0
    %1439 = vmatprep.subr.bf16.mxu0 0
    %1440 = vmatpush1.bf16.msra.mxu0 0
    %1441 = vmatprep.subr.bf16.mxu0 0
    %1442 = vmatpush1.bf16.msra.mxu0 0
    %1443 = vmatprep.subr.bf16.mxu0 0
    %1444 = vmatpush1.bf16.msra.mxu0 0
    %1445 = vmatprep.subr.bf16.mxu0 0
    %1446 = vmatpush1.bf16.msra.mxu0 0
    %1447 = vmatprep.subr.bf16.mxu0 0
    %1448 = vmatpush1.bf16.msra.mxu0 0
    %1449 = vmatprep.subr.bf16.mxu0 0
    %1450 = vmatpush1.bf16.msra.mxu0 0
    %1451 = vmatprep.subr.bf16.mxu0 0
    %1452 = vmatpush1.bf16.msra.mxu0 0
    %1453 = vmatprep.subr.bf16.mxu0 0
    %1454 = vmatpush1.bf16.msra.mxu0 0
    %1455 = vmatprep.subr.bf16.mxu0 0
    %1456 = vmatpush1.bf16.msra.mxu0 0
    %1457 = vmatprep.subr.bf16.mxu0 0
    %1458 = vmatpush1.bf16.msra.mxu0 0
    %1459 = vmatprep.subr.bf16.mxu0 0
    %1460 = vmatpush1.bf16.msra.mxu0 0
    %1461 = vmatprep.subr.bf16.mxu0 0
    %1462 = vmatpush1.bf16.msra.mxu0 0
    %1463 = vmatprep.mubr.bf16.mxu0 0
    %1464 = vmatmul.mubr.bf16.gmra.mrb[0].mxu0 %v1272
    %v1465 = vpop.f32.mrb[0].mxu0
    %v1466 = vadd.f32 0.0, %v1465
    %v1467 = vpop.f32.mrb[0].mxu0
    %v1468 = vadd.f32 0.0, %v1467
    %v1469 = vpop.f32.mrb[0].mxu0
    %v1470 = vadd.f32 0.0, %v1469
    %v1471 = vpop.f32.mrb[0].mxu0
    %v1472 = vadd.f32 0.0, %v1471
    %1473 = vdwg.mxu0
    %v1474 = vmax.f32 %v1337, 0.0
    %v1475 = vmax.f32 %v1339, 0.0
    %v1476 = vmax.f32 %v1380, 0.0
    %v1477 = vmax.f32 %v1382, 0.0
    %v1478 = vmax.f32 %v1423, 0.0
    %v1479 = vmax.f32 %v1425, 0.0
    %v1480 = vmax.f32 %v1466, 0.0
    %v1481 = vmax.f32 %v1468, 0.0
    %v1482 = vmax.f32 %v1341, 0.0
    %v1483 = vmax.f32 %v1343, 0.0
    %v1484 = vmax.f32 %v1384, 0.0
    %v1485 = vmax.f32 %v1386, 0.0
    %v1486 = vmax.f32 %v1427, 0.0
    %v1487 = vmax.f32 %v1429, 0.0
    %v1488 = vmax.f32 %v1470, 0.0
    %v1489 = vmax.f32 %v1472, 0.0
    %v1490 = vmax.f32 %v1474, %v1475
    %1491 = vmax.xlane.f32.xlu0 %v1490
    %v1492 = vpop.xlane.xlu0 %1491
    %v1493 = vmax.f32 %v1482, %v1483
    %1494 = vmax.xlane.f32.xlu0 %v1493
    %v1495 = vpop.xlane.xlu0 %1494
    %v1496 = vmax.f32 %v1478, %v1479
    %1497 = vmax.xlane.f32.xlu0 %v1496
    %v1498 = vpop.xlane.xlu0 %1497
    %v1499 = vmax.f32 %v1486, %v1487
    %1500 = vmax.xlane.f32.xlu0 %v1499
    %v1501 = vpop.xlane.xlu0 %1500
    %vm1502 = vcmask 7168
    %v1503 = vsel %vm1502, %v1492, %v1498
    %v1504 = vsel %vm1502, %v1495, %v1501
    %v1505 = vmax.f32 %v1476, %v1477
    %1506 = vmax.xlane.f32.xlu0 %v1505
    %v1507 = vpop.xlane.xlu0 %1506
    %v1508 = vmax.f32 %v1484, %v1485
    %1509 = vmax.xlane.f32.xlu0 %v1508
    %v1510 = vpop.xlane.xlu0 %1509
    %v1511 = vmax.f32 %v1480, %v1481
    %1512 = vmax.xlane.f32.xlu0 %v1511
    %v1513 = vpop.xlane.xlu0 %1512
    %v1514 = vmax.f32 %v1488, %v1489
    %1515 = vmax.xlane.f32.xlu0 %v1514
    %v1516 = vpop.xlane.xlu0 %1515
    %v1517 = vsel %vm1502, %v1507, %v1513
    %v1518 = vsel %vm1502, %v1510, %v1516
    %v1519 = vld [vmem:[%s3] sm:$0xff]
    %v1520 = vld [vmem:[%s3 + $0x8] sm:$0xff]
    %v1521 = vld [vmem:[%s3 + $0x10] sm:$0xff]
    %v1522 = vld [vmem:[%s3 + $0x18] sm:$0xff]
    %1524 = vset.pattern.permute.xlu0 0
    %1525 = vperm.xlu0 %1524, %v1519
    %v1526 = vpop.permute.xlu0 %1525
    %1529 = vset.pattern.permute.xlu0 0
    %1530 = vperm.xlu0 %1529, %v1520
    %v1531 = vpop.permute.xlu0 %1530
    %1534 = vset.pattern.permute.xlu0 0
    %1535 = vperm.xlu0 %1534, %v1521
    %v1536 = vpop.permute.xlu0 %1535
    %1539 = vset.pattern.permute.xlu0 0
    %1540 = vperm.xlu0 %1539, %v1522
    %v1541 = vpop.permute.xlu0 %1540
    %v1543 = vmul.f32 %v1503, %v1526
    %v1544 = vmul.f32 %v1504, %v1531
    %v1545 = vmul.f32 %v1517, %v1536
    %v1546 = vmul.f32 %v1518, %v1541
    %vm1547 = vcmask 15360
    %v1548 = vsel %vm1547, %v1543, 0.0
    %v1549 = vsel %vm1547, %v1544, 0.0
    %v1550 = vadd.f32 %v1548, %v1549
    %v1551 = vsel %vm1547, %v1545, 0.0
    %v1552 = vadd.f32 %v1550, %v1551
    %v1553 = vsel %vm1547, %v1546, 0.0
    %v1554 = vadd.f32 %v1552, %v1553
    %v1555 = vrot.slane %v1554, 4
    %v1556 = vadd.f32 %v1554, %v1555
    %v1557 = vrot.slane %v1556, 2
    %v1558 = vadd.f32 %v1556, %v1557
    %v1559 = vrot.slane %v1558, 1
    %v1560 = vadd.f32 %v1558, %v1559
    %v1561 = vld [vmem:[#allocation5] sm:$0x1]
    %1563 = vset.pattern.permute.xlu0 0
    %1564 = vperm.xlu0 %1563, %v1561
    %v1565 = vpop.permute.xlu0 %1564
    %v1567 = vlaneseq
    %v1568 = vshrl.u32 %v1567, 7
    %v1569 = vsub.s32 0, %v1568
    %v1570 = vrot.slane %v1565, %v1569
    %v1571 = vadd.f32 %v1560, %v1570
    %vm1572 = vcmask 8192
    %1573 = vst.msk [vmem:[#allocation9] sm:$0x1] %vm1572, %v1571
    // Predicated region
    $region26: #{tpu_custom_call.1} parent=1 // pred_check
      _
    $region27: #{tpu_custom_call.1} parent=1 // pred_check_branch
      %1575 = sbr.rel (0) target = $region29
    $region28: #{tpu_custom_call.1} parent=1 // pred_region
      %s1577 = ssub.s32 16, 16
      %1578 = vsyncadd [#allocation8], %s1577
      %s1580 = sshll.u32 [#allocation9], 4
      %s1581 = int_to_ptr.vmem [resolvable:$true] %s1580
      %1583 = dma.vmem_to_hbm [thread:$0]  %s1581, 16, %s5, [#allocation8]
    $region29: #{tpu_custom_call.1} parent=1 // pred_fallthru
      _
    // Predicated region
    $region30: #{tpu_custom_call.1} parent=1 // pred_check
      _
    $region31: #{tpu_custom_call.1} parent=1 // pred_check_branch
      %1585 = sbr.rel (0) target = $region33
    $region32: #{tpu_custom_call.1} parent=1 // pred_region
      %1586 = dma.done [#allocation8], 16
    $region33: #{tpu_custom_call.1} parent=1 // pred_fallthru
      _
    %1587 = vsyncpa [#allocation7], 1
    %1588 = vsyncpa [#allocation8], 1

</llo_original>
